<compile_context>
chip_gen: v5e
topology: v5e:2x2
jax: 0.10.0
libtpu: 0.0.40
codegen_flags: <defaults>
</compile_context>

<pallas_src>
import functools

import jax
import jax.numpy as jnp
from jax.experimental import pallas as pl
from jax.experimental.pallas import tpu as pltpu

_NEG_BIG = -1e30           # finite stand-in for -inf
_ROW_PAD_CLS = -2147483647  # class sentinel for padded anchor rows
_COL_PAD_CLS = -2147483646  # class sentinel for padded contrast columns


def _round_up(x, m):
    return (x + m - 1) // m * m


def _supcon_kernel(feat_r_ref, feat_cT_ref, cls_r_ref, invd_r_ref,
                   cls_c_ref, colw_ref, out_ref,
                   m_s, l_s, am_t, am_hi, aadc_t, aadc_hi, acr_m, acr_adc,
                   *, n_valid, batch_size, tm, tn,
                   loss_scale, adv_weight, has_col_pad, bf16_exp):
    r = pl.program_id(0)   # anchor-row tile (parallel / megacore-sharded)
    k = pl.program_id(1)   # contrast-column tile (reduction, arbitrary)

    @pl.when(k == 0)
    def _init():
        m_s[...] = jnp.full(m_s.shape, _NEG_BIG, jnp.float32)
        for ref in (l_s, am_t, am_hi, aadc_t, aadc_hi, acr_m, acr_adc):
            ref[...] = jnp.zeros(ref.shape, jnp.float32)

    # bf16 operands -> MXU-native matmul with f32 accumulation.  1/temperature is
    # already folded into the row operand; the column operand is pre-transposed
    # so the contraction is A[TM,Dp] . B[Dp,TN] (no per-tile XLU transpose).
    adc = jnp.dot(feat_r_ref[...], feat_cT_ref[...],
                  preferred_element_type=jnp.float32)            # [TM, TN] f32

    cw = colw_ref[k]                      # resident per-column table, (8, TN)
    hi_c = cw[0:1, :]                     # 1.0 iff  B <= col < N
    wcr_c = cw[1:2, :]                    # hi * (1/denom(col)), inf-guarded
    if has_col_pad:
        adc = adc + cw[2:3, :]            # -1e30 additive bias on padded columns

    # diag location inside this tile: col_local - row_local == r*tm - k*tn
    delta = (jax.lax.broadcasted_iota(jnp.int32, (tm, tn), 1)
             - jax.lax.broadcasted_iota(jnp.int32, (tm, tn), 0))
    not_diag = delta != (r * tm - k * tn)

    # streaming LSE: diag included in the row max, excluded from the exp-sum.
    m_new = jnp.maximum(m_s[...], jnp.max(adc, axis=1, keepdims=True))
    exp_arg = jnp.where(not_diag, adc, _NEG_BIG) - m_new
    if bf16_exp:   # v6e/v7x: bf16 EUP; values are exp(x - max) in [0, 1]
        p = jnp.exp(exp_arg.astype(jnp.bfloat16)).astype(jnp.float32)
    else:
        p = jnp.exp(exp_arg)
    l_s[...] = jnp.exp(m_s[...] - m_new) * l_s[...] + jnp.sum(p, axis=1, keepdims=True)
    m_s[...] = m_new

    # positive mask built in-registers from class ids (no [N,N] mask DMA).
    posf = jnp.logical_and(cls_r_ref[...] == cls_c_ref[k], not_diag).astype(jnp.float32)
    padc = posf * adc
    ph = posf * hi_c
    pw = posf * wcr_c
    am_t[...] += jnp.sum(posf, axis=1, keepdims=True)
    aadc_t[...] += jnp.sum(padc, axis=1, keepdims=True)
    am_hi[...] += jnp.sum(ph, axis=1, keepdims=True)
    aadc_hi[...] += jnp.sum(ph * adc, axis=1, keepdims=True)
    acr_m[...] += jnp.sum(pw, axis=1, keepdims=True)
    acr_adc[...] += jnp.sum(pw * adc, axis=1, keepdims=True)

    @pl.when(k == pl.num_programs(1) - 1)
    def _finalize():
        m_tot = m_s[...] + jnp.log(l_s[...])        # logits_max + log(sum exp_logits)
        rs_tot = aadc_t[...] - m_tot * am_t[...]    # sum_cols     mask * log_prob
        rs_hi = aadc_hi[...] - m_tot * am_hi[...]   # sum_{col>=B} mask * log_prob
        rs_lo = rs_tot - rs_hi
        cross = acr_adc[...] - m_tot * acr_m[...]   # sum_{col>=B} mask*log_prob/denom(col)
        i_g = r * tm + jax.lax.broadcasted_iota(jnp.int32, (tm, 1), 0)
        first_block = i_g < batch_size
        # rows < B : mix row-sum = rs_lo + adv_weight * rs_hi        (/ denom(row))
        # rows >= B: mix row-sum = rs_hi (+ aliased block, attributed to rows < B)
        own = jnp.where(first_block, rs_lo + adv_weight * rs_hi, rs_hi) * invd_r_ref[...]
        contrib = own + jnp.where(first_block, (adv_weight * adv_weight) * cross, 0.0)
        out_ref[...] = jnp.where(i_g < n_valid, loss_scale * contrib, 0.0)


def _vmem_budget_bytes():
    cap = 64 << 20
    try:
        info = pltpu.get_tpu_info()
        cap = int(getattr(info, "vmem_capacity_bytes", cap)) or cap
    except Exception:
        pass
    # v5e/v6e (128 MiB physical) -> 96 MiB budget; v7x (64 MiB / TC) -> 48 MiB.
    return int(min(cap * 3 // 4, 96 << 20))


def _use_bf16_exp():
    try:
        kind = jax.devices()[0].device_kind.lower()
    except Exception:
        return False
    return ("v6" in kind) or ("v7" in kind)   # bf16 EUP; keep f32 exp on v5e and older


def _pick_tiles(n_pad, dp, budget):
    divs = [m for m in range(128, n_pad + 1, 128) if n_pad % m == 0]

    def fits(tm_, tn_):
        oper = 2 * 2 * (tm_ + tn_) * dp * 2     # double-buffered bf16 feature tiles
        scr = 8 * tm_ * 128 * 4                 # (TM,1) scratches, lane-padded
        tmp = 8 * tm_ * tn_ * 4                 # [TM,TN] f32 compute temporaries
        resident = 12 * n_pad * 4               # per-column tables
        return oper + scr + tmp + resident <= budget

    tn = max([t for t in divs if t <= 512] or [divs[0]])
    # keep >= 2 row tiles so the "parallel" axis can spread over 2 TCs (v7x)
    tm_cap = min(1024, n_pad if n_pad < 256 else n_pad // 2)
    while True:
        ok = [t for t in divs if t <= tm_cap and fits(t, tn)]
        if ok:
            return max(ok), tn
        smaller = [t for t in divs if t < tn]
        if not smaller:
            return divs[0], divs[0]
        tn = max(smaller)


def ori_supcon_loss(features, labels=None, mask=None, *,
                    temperature=0.07, contrast_mode='all',
                    base_temperature=0.07, adv_weight=2.0,
                    block_m=None, block_n=None):
    """Pallas forward of ori_SupConLoss (contrast_mode='all', stop_grad=False)."""
    features = jnp.asarray(features)
    if features.ndim < 3:
        raise ValueError('`features` needs to be [bsz, n_views, ...]')
    if features.ndim > 3:
        features = features.reshape(features.shape[0], features.shape[1], -1)
    if contrast_mode != 'all':
        # TODO(synk): contrast_mode='one' (anchor = first view only).
        raise NotImplementedError("only contrast_mode='all' is implemented")
    # TODO(synk): stop_grad=True / stop_grad_sd forward variant (different ac_square mix).

    B, V, D = features.shape
    N = B * V

    if labels is not None and mask is not None:
        raise ValueError('Cannot define both `labels` and `mask`')
    if mask is not None:
        # TODO(synk): arbitrary user-supplied [bsz,bsz] masks need an extra tiled operand.
        raise NotImplementedError('custom `mask` is not supported by this kernel')
    if labels is None:
        cls_b = jnp.arange(B, dtype=jnp.int32)   # SimCLR: positive = same sample index
        counts_b = jnp.ones((B,), jnp.float32)
    else:
        labels = jnp.asarray(labels).reshape(-1)
        if labels.shape[0] != B:
            raise ValueError('Num of labels does not match num of features')
        cls_b = labels.astype(jnp.int32)
        counts_b = jnp.sum((cls_b[:, None] == cls_b[None, :]).astype(jnp.float32), axis=1)

    inv_temp = 1.0 / float(temperature)

    # Row v*B + b of contrast_feature is sample b, view v (torch.cat(unbind(dim=1))).
    feat = jnp.transpose(features, (1, 0, 2)).reshape(N, D).astype(jnp.float32)
    cls = jnp.tile(cls_b, V)
    denom_b = V * counts_b - 1.0                                  # mask.sum(1) per row
    invd_row = jnp.tile(jnp.where(denom_b > 0, 1.0 / denom_b, jnp.inf), V)   # PyTorch-like
    invd_col = jnp.tile(jnp.where(denom_b > 0, 1.0 / denom_b, 0.0), V)       # inf-guarded

    Dp = _round_up(max(D, 1), 128)
    N_pad = _round_up(N, 128)
    budget = _vmem_budget_bytes()
    TM, TN = _pick_tiles(N_pad, Dp, budget)
    if block_m is not None:
        TM = int(block_m)
    if block_n is not None:
        TN = int(block_n)
    assert N_pad % TM == 0 and N_pad % TN == 0 and TM % 128 == 0 and TN % 128 == 0
    R, K = N_pad // TM, N_pad // TN

    # bf16 feature streams; 1/temperature folded into the row operand; columns
    # stored pre-transposed [Dp, N_pad].
    feat_row = jnp.zeros((N_pad, Dp), jnp.bfloat16).at[:N, :D].set(
        (feat * inv_temp).astype(jnp.bfloat16))
    feat_colT = jnp.zeros((Dp, N_pad), jnp.bfloat16).at[:D, :N].set(
        feat.T.astype(jnp.bfloat16))

    cls_row = jnp.full((N_pad, 1), _ROW_PAD_CLS, jnp.int32).at[:N, 0].set(cls)
    invd_row_p = jnp.zeros((N_pad, 1), jnp.float32).at[:N, 0].set(invd_row)

    col_idx = jnp.arange(N_pad, dtype=jnp.int32)
    hi = ((col_idx >= B) & (col_idx < N)).astype(jnp.float32)
    wcross = jnp.zeros((N_pad,), jnp.float32).at[:N].set(invd_col) * hi
    cbias = jnp.where(col_idx < N, 0.0, _NEG_BIG).astype(jnp.float32)
    colw = (jnp.zeros((8, N_pad), jnp.float32)
            .at[0].set(hi).at[1].set(wcross).at[2].set(cbias))
    colw = colw.reshape(8, K, TN).transpose(1, 0, 2)                # (K, 8, TN)
    cls_col = jnp.full((N_pad,), _COL_PAD_CLS, jnp.int32).at[:N].set(cls).reshape(K, 1, TN)

    kernel = functools.partial(
        _supcon_kernel,
        n_valid=N, batch_size=B, tm=TM, tn=TN,
        loss_scale=-(float(temperature) / float(base_temperature)),
        adv_weight=float(adv_weight),
        has_col_pad=(N < N_pad),
        bf16_exp=_use_bf16_exp())

    out = pl.pallas_call(
        kernel,
        out_shape=jax.ShapeDtypeStruct((N_pad, 1), jnp.float32),
        grid_spec=pltpu.PrefetchScalarGridSpec(
            num_scalar_prefetch=0,
            grid=(R, K),
            in_specs=[
                pl.BlockSpec((TM, Dp), lambda r, k: (r, 0)),        # anchor rows (bf16)
                pl.BlockSpec((Dp, TN), lambda r, k: (0, k)),        # contrast cols, pre-T (bf16)
                pl.BlockSpec((TM, 1), lambda r, k: (r, 0)),         # class ids (rows)
                pl.BlockSpec((TM, 1), lambda r, k: (r, 0)),         # 1/denom (rows)
                pl.BlockSpec((K, 1, TN), lambda r, k: (0, 0, 0)),   # class ids (cols), resident
                pl.BlockSpec((K, 8, TN), lambda r, k: (0, 0, 0)),   # per-column weights, resident
            ],
            out_specs=pl.BlockSpec((TM, 1), lambda r, k: (r, 0)),
            scratch_shapes=[pltpu.VMEM((TM, 1), jnp.float32)] * 8,
        ),
        compiler_params=pltpu.CompilerParams(
            dimension_semantics=("parallel", "arbitrary"),
            vmem_limit_bytes=budget),
        cost_estimate=pl.CostEstimate(
            flops=2 * N_pad * N_pad * Dp,
            transcendentals=N_pad * N_pad,
            bytes_accessed=int((R + 1) * N_pad * Dp * 2 + 16 * N_pad * 4)),
    )(feat_row, feat_colT, cls_row, invd_row_p, cls_col, colw)

    # loss.view(anchor_count, batch_size).mean() == (sum of per-row terms) / N.
    return jnp.sum(out) / N


def _reference_jnp(features, labels=None, *, temperature=0.07,
                   base_temperature=0.07, adv_weight=2.0):
    """Pure-jnp reference replicating the PyTorch forward (incl. aliasing quirk)."""
    B, V, D = features.shape
    N = B * V
    feat = jnp.transpose(features, (1, 0, 2)).reshape(N, D).astype(jnp.float32)
    adc = (feat @ feat.T) / temperature
    logits = adc - jnp.max(adc, axis=1, keepdims=True)
    logits_mask = 1.0 - jnp.eye(N, dtype=jnp.float32)
    if labels is None:
        base = jnp.eye(B, dtype=jnp.float32)
    else:
        lab = jnp.asarray(labels).reshape(-1, 1)
        base = (lab == lab.T).astype(jnp.float32)
    mask = jnp.tile(base, (V, V)) * logits_mask
    exp_logits = jnp.exp(logits) * logits_mask
    log_prob = logits - jnp.log(jnp.sum(exp_logits, axis=1, keepdims=True))
    loss_square = mask * log_prob
    ur = loss_square[0:B, B:]
    mix = loss_square.at[0:B, B:].set(ur * adv_weight)
    mix = mix.at[B:, 0:B].set(ur.T * adv_weight * adv_weight)   # PyTorch view aliasing
    mean_log_prob_pos = jnp.sum(mix, axis=1) / jnp.sum(mask, axis=1)
    loss = -(temperature / base_temperature) * mean_log_prob_pos
    return jnp.mean(loss.reshape(V, B))


if __name__ == "__main__":
    key = jax.random.PRNGKey(0)
    k1, k2 = jax.random.split(key)

    # Case 1: SimCLR default (labels=None, mask=None), tiny single-tile shape.
    B, V, D = 8, 2, 32
    feats = jax.random.normal(k1, (B, V, D), dtype=jnp.float32)
    feats = feats / jnp.linalg.norm(feats, axis=-1, keepdims=True)
    loss = jax.block_until_ready(ori_supcon_loss(feats, temperature=0.07,
                                                 base_temperature=0.07, adv_weight=2.0))
    ref = jax.block_until_ready(_reference_jnp(feats, temperature=0.07,
                                               base_temperature=0.07, adv_weight=2.0))
    if not jnp.allclose(loss, ref, rtol=2e-2, atol=2e-2):
        raise AssertionError(f"SimCLR mismatch: kernel={loss}, ref={ref}")

    # Case 2: supervised labels; N=272 -> padded to 384 (row/col padding,
    # multiple row tiles, auto tile heuristic).
    B2, V2, D2 = 136, 2, 40
    feats2 = jax.random.normal(k2, (B2, V2, D2), dtype=jnp.float32)
    feats2 = feats2 / jnp.linalg.norm(feats2, axis=-1, keepdims=True)
    labels2 = jnp.arange(B2, dtype=jnp.int32) % 17
    loss2 = jax.block_until_ready(ori_supcon_loss(feats2, labels=labels2,
                                                  temperature=0.07,
                                                  base_temperature=0.07, adv_weight=2.0))
    ref2 = jax.block_until_ready(_reference_jnp(feats2, labels=labels2,
                                                temperature=0.07,
                                                base_temperature=0.07, adv_weight=2.0))
    if not jnp.allclose(loss2, ref2, rtol=2e-2, atol=2e-2):
        raise AssertionError(f"SupCon mismatch: kernel={loss2}, ref={ref2}")

    # Case 3: same data with forced 128x128 tiles -> 3x3 grid, exercises the
    # multi-column-tile streaming-LSE path (init / online max / finalize).
    loss3 = jax.block_until_ready(ori_supcon_loss(feats2, labels=labels2,
                                                  temperature=0.07,
                                                  base_temperature=0.07, adv_weight=2.0,
                                                  block_m=128, block_n=128))
    if not jnp.allclose(loss3, ref2, rtol=2e-2, atol=2e-2):
        raise AssertionError(f"SupCon (tiled) mismatch: kernel={loss3}, ref={ref2}")

    print("KERNEL_OK")
</pallas_src>

<mosaic_0001>
module attributes {stable_mosaic.version = 11 : i64} {
  func.func @_supcon_kernel(%arg0: i32, %arg1: i32, %arg2: memref<128x128xbf16, #tpu.memory_space<vmem>>, %arg3: memref<128x128xbf16, #tpu.memory_space<vmem>>, %arg4: memref<128x1xi32, #tpu.memory_space<vmem>>, %arg5: memref<128x1xf32, #tpu.memory_space<vmem>>, %arg6: memref<1x1x128xi32, #tpu.memory_space<vmem>>, %arg7: memref<1x8x128xf32, #tpu.memory_space<vmem>>, %arg8: memref<128x1xf32, #tpu.memory_space<vmem>>, %arg9: memref<128x1xf32, #tpu.memory_space<vmem>>, %arg10: memref<128x1xf32, #tpu.memory_space<vmem>>, %arg11: memref<128x1xf32, #tpu.memory_space<vmem>>, %arg12: memref<128x1xf32, #tpu.memory_space<vmem>>, %arg13: memref<128x1xf32, #tpu.memory_space<vmem>>, %arg14: memref<128x1xf32, #tpu.memory_space<vmem>>, %arg15: memref<128x1xf32, #tpu.memory_space<vmem>>, %arg16: memref<128x1xf32, #tpu.memory_space<vmem>>) attributes {dimension_semantics = [#tpu.dimension_semantics<parallel>, #tpu.dimension_semantics<arbitrary>], iteration_bounds = array<i64: 1, 1>, scalar_prefetch = 0 : i64, scratch_operands = 8 : i64, tpu.core_type = #tpu.core_type<tc>, window_params = [{transform_indices = @transform_0, window_bounds = array<i64: 128, 128>}, {transform_indices = @transform_1, window_bounds = array<i64: 128, 128>}, {transform_indices = @transform_2, window_bounds = array<i64: 128, 1>}, {transform_indices = @transform_3, window_bounds = array<i64: 128, 1>}, {pipeline_mode = #tpu.pipeline_mode<synchronous>, transform_indices = @transform_4, window_bounds = array<i64: 1, 1, 128>}, {pipeline_mode = #tpu.pipeline_mode<synchronous>, transform_indices = @transform_5, window_bounds = array<i64: 1, 8, 128>}, {transform_indices = @transform_6, window_bounds = array<i64: 128, 1>}]} {
    %c0_i32 = arith.constant 0 : i32
    %0 = arith.cmpi eq, %arg1, %c0_i32 : i32
    %1 = arith.extui %0 : i1 to i32
    %c0_i32_0 = arith.constant 0 : i32
    %2 = arith.cmpi ne, %1, %c0_i32_0 : i32
    scf.if %2 {
      %cst_56 = arith.constant -1.000000e+30 : f32
      %91 = vector.broadcast %cst_56 : f32 to vector<128x1xf32>
      %c0_57 = arith.constant 0 : index
      %c0_58 = arith.constant 0 : index
      %92 = vector.load %arg9[%c0_57, %c0_58] : memref<128x1xf32, #tpu.memory_space<vmem>>, vector<128x1xf32>
      tpu.vector_store %arg9[%c0_57, %c0_58], %91 {strides = array<i32>} : memref<128x1xf32, #tpu.memory_space<vmem>>, vector<128x1xf32>,
      %cst_59 = arith.constant 0.000000e+00 : f32
      %93 = vector.broadcast %cst_59 : f32 to vector<128x1xf32>
      %c0_60 = arith.constant 0 : index
      %c0_61 = arith.constant 0 : index
      %94 = vector.load %arg10[%c0_60, %c0_61] : memref<128x1xf32, #tpu.memory_space<vmem>>, vector<128x1xf32>
      tpu.vector_store %arg10[%c0_60, %c0_61], %93 {strides = array<i32>} : memref<128x1xf32, #tpu.memory_space<vmem>>, vector<128x1xf32>,
      %cst_62 = arith.constant 0.000000e+00 : f32
      %95 = vector.broadcast %cst_62 : f32 to vector<128x1xf32>
      %c0_63 = arith.constant 0 : index
      %c0_64 = arith.constant 0 : index
      %96 = vector.load %arg11[%c0_63, %c0_64] : memref<128x1xf32, #tpu.memory_space<vmem>>, vector<128x1xf32>
      tpu.vector_store %arg11[%c0_63, %c0_64], %95 {strides = array<i32>} : memref<128x1xf32, #tpu.memory_space<vmem>>, vector<128x1xf32>,
      %cst_65 = arith.constant 0.000000e+00 : f32
      %97 = vector.broadcast %cst_65 : f32 to vector<128x1xf32>
      %c0_66 = arith.constant 0 : index
      %c0_67 = arith.constant 0 : index
      %98 = vector.load %arg12[%c0_66, %c0_67] : memref<128x1xf32, #tpu.memory_space<vmem>>, vector<128x1xf32>
      tpu.vector_store %arg12[%c0_66, %c0_67], %97 {strides = array<i32>} : memref<128x1xf32, #tpu.memory_space<vmem>>, vector<128x1xf32>,
      %cst_68 = arith.constant 0.000000e+00 : f32
      %99 = vector.broadcast %cst_68 : f32 to vector<128x1xf32>
      %c0_69 = arith.constant 0 : index
      %c0_70 = arith.constant 0 : index
      %100 = vector.load %arg13[%c0_69, %c0_70] : memref<128x1xf32, #tpu.memory_space<vmem>>, vector<128x1xf32>
      tpu.vector_store %arg13[%c0_69, %c0_70], %99 {strides = array<i32>} : memref<128x1xf32, #tpu.memory_space<vmem>>, vector<128x1xf32>,
      %cst_71 = arith.constant 0.000000e+00 : f32
      %101 = vector.broadcast %cst_71 : f32 to vector<128x1xf32>
      %c0_72 = arith.constant 0 : index
      %c0_73 = arith.constant 0 : index
      %102 = vector.load %arg14[%c0_72, %c0_73] : memref<128x1xf32, #tpu.memory_space<vmem>>, vector<128x1xf32>
      tpu.vector_store %arg14[%c0_72, %c0_73], %101 {strides = array<i32>} : memref<128x1xf32, #tpu.memory_space<vmem>>, vector<128x1xf32>,
      %cst_74 = arith.constant 0.000000e+00 : f32
      %103 = vector.broadcast %cst_74 : f32 to vector<128x1xf32>
      %c0_75 = arith.constant 0 : index
      %c0_76 = arith.constant 0 : index
      %104 = vector.load %arg15[%c0_75, %c0_76] : memref<128x1xf32, #tpu.memory_space<vmem>>, vector<128x1xf32>
      tpu.vector_store %arg15[%c0_75, %c0_76], %103 {strides = array<i32>} : memref<128x1xf32, #tpu.memory_space<vmem>>, vector<128x1xf32>,
      %cst_77 = arith.constant 0.000000e+00 : f32
      %105 = vector.broadcast %cst_77 : f32 to vector<128x1xf32>
      %c0_78 = arith.constant 0 : index
      %c0_79 = arith.constant 0 : index
      %106 = vector.load %arg16[%c0_78, %c0_79] : memref<128x1xf32, #tpu.memory_space<vmem>>, vector<128x1xf32>
      tpu.vector_store %arg16[%c0_78, %c0_79], %105 {strides = array<i32>} : memref<128x1xf32, #tpu.memory_space<vmem>>, vector<128x1xf32>,
    } else {
    }
    %c0 = arith.constant 0 : index
    %c0_1 = arith.constant 0 : index
    %3 = vector.load %arg2[%c0, %c0_1] : memref<128x128xbf16, #tpu.memory_space<vmem>>, vector<128x128xbf16>
    %c0_2 = arith.constant 0 : index
    %c0_3 = arith.constant 0 : index
    %4 = vector.load %arg3[%c0_2, %c0_3] : memref<128x128xbf16, #tpu.memory_space<vmem>>, vector<128x128xbf16>
    %cst = arith.constant dense<0.000000e+00> : vector<128x128xf32>
    %5 = tpu.matmul %3, %4, %cst {dimension_numbers = #tpu.dot_dimension_numbers<[1], [0], [0], [1], [0, 0, 1, 1], [], []>} : vector<128x128xbf16>, vector<128x128xbf16>, vector<128x128xf32> -> vector<128x128xf32>
    %6 = arith.index_cast %arg1 : i32 to index
    %c0_4 = arith.constant 0 : index
    %c0_5 = arith.constant 0 : index
    %7 = vector.load %arg7[%6, %c0_4, %c0_5] : memref<1x8x128xf32, #tpu.memory_space<vmem>>, vector<1x8x128xf32>
    %8 = vector.shape_cast %7 : vector<1x8x128xf32> to vector<8x128xf32>
    %9 = vector.extract_strided_slice %8 {offsets = [0, 0], sizes = [1, 128], strides = [1, 1]} : vector<8x128xf32> to vector<1x128xf32>
    %10 = vector.extract_strided_slice %8 {offsets = [1, 0], sizes = [1, 128], strides = [1, 1]} : vector<8x128xf32> to vector<1x128xf32>
    %11 = vector.extract_strided_slice %8 {offsets = [2, 0], sizes = [1, 128], strides = [1, 1]} : vector<8x128xf32> to vector<1x128xf32>
    %12 = vector.broadcast %11 : vector<1x128xf32> to vector<128x128xf32>
    %13 = arith.addf %5, %12 : vector<128x128xf32>
    %14 = tpu.iota {dimensions = array<i32: 1>} : vector<128x128xi32>
    %15 = tpu.iota {dimensions = array<i32: 0>} : vector<128x128xi32>
    %16 = arith.subi %14, %15 : vector<128x128xi32>
    %c128_i32 = arith.constant 128 : i32
    %17 = arith.muli %arg0, %c128_i32 : i32
    %c128_i32_6 = arith.constant 128 : i32
    %18 = arith.muli %arg1, %c128_i32_6 : i32
    %19 = arith.subi %17, %18 : i32
    %20 = vector.broadcast %19 : i32 to vector<128x128xi32>
    %21 = arith.cmpi ne, %16, %20 : vector<128x128xi32>
    %c0_7 = arith.constant 0 : index
    %c0_8 = arith.constant 0 : index
    %22 = vector.load %arg9[%c0_7, %c0_8] : memref<128x1xf32, #tpu.memory_space<vmem>>, vector<128x1xf32>
    %cst_9 = arith.constant dense<0xFF800000> : vector<128xf32>
    %23 = vector.multi_reduction <maximumf>, %13, %cst_9 [1] : vector<128x128xf32> to vector<128xf32>
    %24 = vector.shape_cast %23 : vector<128xf32> to vector<128x1xf32>
    %25 = arith.maximumf %22, %24 : vector<128x1xf32>
    %cst_10 = arith.constant -1.000000e+30 : f32
    %26 = vector.broadcast %cst_10 : f32 to vector<128x128xf32>
    %27 = arith.select %21, %13, %26 : vector<128x128xi1>, vector<128x128xf32>
    %28 = vector.broadcast %25 : vector<128x1xf32> to vector<128x128xf32>
    %29 = arith.subf %27, %28 : vector<128x128xf32>
    %30 = math.exp %29 : vector<128x128xf32>
    %c0_11 = arith.constant 0 : index
    %c0_12 = arith.constant 0 : index
    %31 = vector.load %arg9[%c0_11, %c0_12] : memref<128x1xf32, #tpu.memory_space<vmem>>, vector<128x1xf32>
    %32 = arith.subf %31, %25 : vector<128x1xf32>
    %33 = math.exp %32 : vector<128x1xf32>
    %c0_13 = arith.constant 0 : index
    %c0_14 = arith.constant 0 : index
    %34 = vector.load %arg10[%c0_13, %c0_14] : memref<128x1xf32, #tpu.memory_space<vmem>>, vector<128x1xf32>
    %35 = arith.mulf %33, %34 : vector<128x1xf32>
    %cst_15 = arith.constant dense<0.000000e+00> : vector<128xf32>
    %36 = vector.multi_reduction <add>, %30, %cst_15 [1] : vector<128x128xf32> to vector<128xf32>
    %37 = vector.shape_cast %36 : vector<128xf32> to vector<128x1xf32>
    %38 = arith.addf %35, %37 : vector<128x1xf32>
    %c0_16 = arith.constant 0 : index
    %c0_17 = arith.constant 0 : index
    %39 = vector.load %arg10[%c0_16, %c0_17] : memref<128x1xf32, #tpu.memory_space<vmem>>, vector<128x1xf32>
    tpu.vector_store %arg10[%c0_16, %c0_17], %38 {strides = array<i32>} : memref<128x1xf32, #tpu.memory_space<vmem>>, vector<128x1xf32>,
    %c0_18 = arith.constant 0 : index
    %c0_19 = arith.constant 0 : index
    %40 = vector.load %arg9[%c0_18, %c0_19] : memref<128x1xf32, #tpu.memory_space<vmem>>, vector<128x1xf32>
    tpu.vector_store %arg9[%c0_18, %c0_19], %25 {strides = array<i32>} : memref<128x1xf32, #tpu.memory_space<vmem>>, vector<128x1xf32>,
    %c0_20 = arith.constant 0 : index
    %c0_21 = arith.constant 0 : index
    %41 = vector.load %arg4[%c0_20, %c0_21] : memref<128x1xi32, #tpu.memory_space<vmem>>, vector<128x1xi32>
    %42 = arith.index_cast %arg1 : i32 to index
    %c0_22 = arith.constant 0 : index
    %c0_23 = arith.constant 0 : index
    %43 = vector.load %arg6[%42, %c0_22, %c0_23] : memref<1x1x128xi32, #tpu.memory_space<vmem>>, vector<1x1x128xi32>
    %44 = vector.shape_cast %43 : vector<1x1x128xi32> to vector<1x128xi32>
    %45 = vector.broadcast %41 : vector<128x1xi32> to vector<128x128xi32>
    %46 = vector.broadcast %44 : vector<1x128xi32> to vector<128x128xi32>
    %47 = arith.cmpi eq, %45, %46 : vector<128x128xi32>
    %48 = arith.andi %47, %21 : vector<128x128xi1>
    %49 = arith.extui %48 : vector<128x128xi1> to vector<128x128xi32>
    %50 = arith.sitofp %49 : vector<128x128xi32> to vector<128x128xf32>
    %51 = arith.mulf %50, %13 : vector<128x128xf32>
    %52 = vector.broadcast %9 : vector<1x128xf32> to vector<128x128xf32>
    %53 = arith.mulf %50, %52 : vector<128x128xf32>
    %54 = vector.broadcast %10 : vector<1x128xf32> to vector<128x128xf32>
    %55 = arith.mulf %50, %54 : vector<128x128xf32>
    %c0_24 = arith.constant 0 : index
    %c0_25 = arith.constant 0 : index
    %56 = vector.load %arg11[%c0_24, %c0_25] : memref<128x1xf32, #tpu.memory_space<vmem>>, vector<128x1xf32>
    %cst_26 = arith.constant dense<0.000000e+00> : vector<128xf32>
    %57 = vector.multi_reduction <add>, %50, %cst_26 [1] : vector<128x128xf32> to vector<128xf32>
    %58 = vector.shape_cast %57 : vector<128xf32> to vector<128x1xf32>
    %59 = arith.addf %56, %58 : vector<128x1xf32>
    %c0_27 = arith.constant 0 : index
    %c0_28 = arith.constant 0 : index
    %60 = vector.load %arg11[%c0_27, %c0_28] : memref<128x1xf32, #tpu.memory_space<vmem>>, vector<128x1xf32>
    tpu.vector_store %arg11[%c0_27, %c0_28], %59 {strides = array<i32>} : memref<128x1xf32, #tpu.memory_space<vmem>>, vector<128x1xf32>,
    %c0_29 = arith.constant 0 : index
    %c0_30 = arith.constant 0 : index
    %61 = vector.load %arg13[%c0_29, %c0_30] : memref<128x1xf32, #tpu.memory_space<vmem>>, vector<128x1xf32>
    %cst_31 = arith.constant dense<0.000000e+00> : vector<128xf32>
    %62 = vector.multi_reduction <add>, %51, %cst_31 [1] : vector<128x128xf32> to vector<128xf32>
    %63 = vector.shape_cast %62 : vector<128xf32> to vector<128x1xf32>
    %64 = arith.addf %61, %63 : vector<128x1xf32>
    %c0_32 = arith.constant 0 : index
    %c0_33 = arith.constant 0 : index
    %65 = vector.load %arg13[%c0_32, %c0_33] : memref<128x1xf32, #tpu.memory_space<vmem>>, vector<128x1xf32>
    tpu.vector_store %arg13[%c0_32, %c0_33], %64 {strides = array<i32>} : memref<128x1xf32, #tpu.memory_space<vmem>>, vector<128x1xf32>,
    %c0_34 = arith.constant 0 : index
    %c0_35 = arith.constant 0 : index
    %66 = vector.load %arg12[%c0_34, %c0_35] : memref<128x1xf32, #tpu.memory_space<vmem>>, vector<128x1xf32>
    %cst_36 = arith.constant dense<0.000000e+00> : vector<128xf32>
    %67 = vector.multi_reduction <add>, %53, %cst_36 [1] : vector<128x128xf32> to vector<128xf32>
    %68 = vector.shape_cast %67 : vector<128xf32> to vector<128x1xf32>
    %69 = arith.addf %66, %68 : vector<128x1xf32>
    %c0_37 = arith.constant 0 : index
    %c0_38 = arith.constant 0 : index
    %70 = vector.load %arg12[%c0_37, %c0_38] : memref<128x1xf32, #tpu.memory_space<vmem>>, vector<128x1xf32>
    tpu.vector_store %arg12[%c0_37, %c0_38], %69 {strides = array<i32>} : memref<128x1xf32, #tpu.memory_space<vmem>>, vector<128x1xf32>,
    %c0_39 = arith.constant 0 : index
    %c0_40 = arith.constant 0 : index
    %71 = vector.load %arg14[%c0_39, %c0_40] : memref<128x1xf32, #tpu.memory_space<vmem>>, vector<128x1xf32>
    %72 = arith.mulf %53, %13 : vector<128x128xf32>
    %cst_41 = arith.constant dense<0.000000e+00> : vector<128xf32>
    %73 = vector.multi_reduction <add>, %72, %cst_41 [1] : vector<128x128xf32> to vector<128xf32>
    %74 = vector.shape_cast %73 : vector<128xf32> to vector<128x1xf32>
    %75 = arith.addf %71, %74 : vector<128x1xf32>
    %c0_42 = arith.constant 0 : index
    %c0_43 = arith.constant 0 : index
    %76 = vector.load %arg14[%c0_42, %c0_43] : memref<128x1xf32, #tpu.memory_space<vmem>>, vector<128x1xf32>
    tpu.vector_store %arg14[%c0_42, %c0_43], %75 {strides = array<i32>} : memref<128x1xf32, #tpu.memory_space<vmem>>, vector<128x1xf32>,
    %c0_44 = arith.constant 0 : index
    %c0_45 = arith.constant 0 : index
    %77 = vector.load %arg15[%c0_44, %c0_45] : memref<128x1xf32, #tpu.memory_space<vmem>>, vector<128x1xf32>
    %cst_46 = arith.constant dense<0.000000e+00> : vector<128xf32>
    %78 = vector.multi_reduction <add>, %55, %cst_46 [1] : vector<128x128xf32> to vector<128xf32>
    %79 = vector.shape_cast %78 : vector<128xf32> to vector<128x1xf32>
    %80 = arith.addf %77, %79 : vector<128x1xf32>
    %c0_47 = arith.constant 0 : index
    %c0_48 = arith.constant 0 : index
    %81 = vector.load %arg15[%c0_47, %c0_48] : memref<128x1xf32, #tpu.memory_space<vmem>>, vector<128x1xf32>
    tpu.vector_store %arg15[%c0_47, %c0_48], %80 {strides = array<i32>} : memref<128x1xf32, #tpu.memory_space<vmem>>, vector<128x1xf32>,
    %c0_49 = arith.constant 0 : index
    %c0_50 = arith.constant 0 : index
    %82 = vector.load %arg16[%c0_49, %c0_50] : memref<128x1xf32, #tpu.memory_space<vmem>>, vector<128x1xf32>
    %83 = arith.mulf %55, %13 : vector<128x128xf32>
    %cst_51 = arith.constant dense<0.000000e+00> : vector<128xf32>
    %84 = vector.multi_reduction <add>, %83, %cst_51 [1] : vector<128x128xf32> to vector<128xf32>
    %85 = vector.shape_cast %84 : vector<128xf32> to vector<128x1xf32>
    %86 = arith.addf %82, %85 : vector<128x1xf32>
    %c0_52 = arith.constant 0 : index
    %c0_53 = arith.constant 0 : index
    %87 = vector.load %arg16[%c0_52, %c0_53] : memref<128x1xf32, #tpu.memory_space<vmem>>, vector<128x1xf32>
    tpu.vector_store %arg16[%c0_52, %c0_53], %86 {strides = array<i32>} : memref<128x1xf32, #tpu.memory_space<vmem>>, vector<128x1xf32>,
    %c0_i32_54 = arith.constant 0 : i32
    %88 = arith.cmpi eq, %arg1, %c0_i32_54 : i32
    %89 = arith.extui %88 : i1 to i32
    %c0_i32_55 = arith.constant 0 : i32
    %90 = arith.cmpi ne, %89, %c0_i32_55 : i32
    scf.if %90 {
      %c0_56 = arith.constant 0 : index
      %c0_57 = arith.constant 0 : index
      %91 = vector.load %arg9[%c0_56, %c0_57] : memref<128x1xf32, #tpu.memory_space<vmem>>, vector<128x1xf32>
      %c0_58 = arith.constant 0 : index
      %c0_59 = arith.constant 0 : index
      %92 = vector.load %arg10[%c0_58, %c0_59] : memref<128x1xf32, #tpu.memory_space<vmem>>, vector<128x1xf32>
      %93 = math.log %92 : vector<128x1xf32>
      %94 = arith.addf %91, %93 : vector<128x1xf32>
      %c0_60 = arith.constant 0 : index
      %c0_61 = arith.constant 0 : index
      %95 = vector.load %arg13[%c0_60, %c0_61] : memref<128x1xf32, #tpu.memory_space<vmem>>, vector<128x1xf32>
      %c0_62 = arith.constant 0 : index
      %c0_63 = arith.constant 0 : index
      %96 = vector.load %arg11[%c0_62, %c0_63] : memref<128x1xf32, #tpu.memory_space<vmem>>, vector<128x1xf32>
      %97 = arith.mulf %94, %96 : vector<128x1xf32>
      %98 = arith.subf %95, %97 : vector<128x1xf32>
      %c0_64 = arith.constant 0 : index
      %c0_65 = arith.constant 0 : index
      %99 = vector.load %arg14[%c0_64, %c0_65] : memref<128x1xf32, #tpu.memory_space<vmem>>, vector<128x1xf32>
      %c0_66 = arith.constant 0 : index
      %c0_67 = arith.constant 0 : index
      %100 = vector.load %arg12[%c0_66, %c0_67] : memref<128x1xf32, #tpu.memory_space<vmem>>, vector<128x1xf32>
      %101 = arith.mulf %94, %100 : vector<128x1xf32>
      %102 = arith.subf %99, %101 : vector<128x1xf32>
      %103 = arith.subf %98, %102 : vector<128x1xf32>
      %c0_68 = arith.constant 0 : index
      %c0_69 = arith.constant 0 : index
      %104 = vector.load %arg16[%c0_68, %c0_69] : memref<128x1xf32, #tpu.memory_space<vmem>>, vector<128x1xf32>
      %c0_70 = arith.constant 0 : index
      %c0_71 = arith.constant 0 : index
      %105 = vector.load %arg15[%c0_70, %c0_71] : memref<128x1xf32, #tpu.memory_space<vmem>>, vector<128x1xf32>
      %106 = arith.mulf %94, %105 : vector<128x1xf32>
      %107 = arith.subf %104, %106 : vector<128x1xf32>
      %c128_i32_72 = arith.constant 128 : i32
      %108 = arith.muli %arg0, %c128_i32_72 : i32
      %109 = tpu.iota {dimensions = array<i32: 0>} : vector<128x1xi32>
      %110 = vector.broadcast %108 : i32 to vector<128x1xi32>
      %111 = arith.addi %110, %109 : vector<128x1xi32>
      %c8_i32 = arith.constant 8 : i32
      %112 = vector.broadcast %c8_i32 : i32 to vector<128x1xi32>
      %113 = arith.cmpi slt, %111, %112 : vector<128x1xi32>
      %cst_73 = arith.constant 2.000000e+00 : f32
      %114 = vector.broadcast %cst_73 : f32 to vector<128x1xf32>
      %115 = arith.mulf %114, %102 : vector<128x1xf32>
      %116 = arith.addf %103, %115 : vector<128x1xf32>
      %117 = arith.select %113, %116, %102 : vector<128x1xi1>, vector<128x1xf32>
      %c0_74 = arith.constant 0 : index
      %c0_75 = arith.constant 0 : index
      %118 = vector.load %arg5[%c0_74, %c0_75] : memref<128x1xf32, #tpu.memory_space<vmem>>, vector<128x1xf32>
      %119 = arith.mulf %117, %118 : vector<128x1xf32>
      %cst_76 = arith.constant 4.000000e+00 : f32
      %120 = vector.broadcast %cst_76 : f32 to vector<128x1xf32>
      %121 = arith.mulf %120, %107 : vector<128x1xf32>
      %cst_77 = arith.constant 0.000000e+00 : f32
      %122 = vector.broadcast %cst_77 : f32 to vector<128x1xf32>
      %123 = arith.select %113, %121, %122 : vector<128x1xi1>, vector<128x1xf32>
      %124 = arith.addf %119, %123 : vector<128x1xf32>
      %c16_i32 = arith.constant 16 : i32
      %125 = vector.broadcast %c16_i32 : i32 to vector<128x1xi32>
      %126 = arith.cmpi slt, %111, %125 : vector<128x1xi32>
      %cst_78 = arith.constant -1.000000e+00 : f32
      %127 = vector.broadcast %cst_78 : f32 to vector<128x1xf32>
      %128 = arith.mulf %127, %124 : vector<128x1xf32>
      %cst_79 = arith.constant 0.000000e+00 : f32
      %129 = vector.broadcast %cst_79 : f32 to vector<128x1xf32>
      %130 = arith.select %126, %128, %129 : vector<128x1xi1>, vector<128x1xf32>
      %c0_80 = arith.constant 0 : index
      %c0_81 = arith.constant 0 : index
      %131 = vector.load %arg8[%c0_80, %c0_81] : memref<128x1xf32, #tpu.memory_space<vmem>>, vector<128x1xf32>
      tpu.vector_store %arg8[%c0_80, %c0_81], %130 {strides = array<i32>} : memref<128x1xf32, #tpu.memory_space<vmem>>, vector<128x1xf32>,
    } else {
    }
    return
  }
  func.func @transform_0(%arg0: i32, %arg1: i32) -> (i32, i32) {
    %c0_i32 = arith.constant 0 : i32
    %c0_i32_0 = arith.constant 0 : i32
    return %arg0, %c0_i32 : i32, i32
  }
  func.func @transform_1(%arg0: i32, %arg1: i32) -> (i32, i32) {
    %c0_i32 = arith.constant 0 : i32
    %c0_i32_0 = arith.constant 0 : i32
    return %c0_i32, %arg1 : i32, i32
  }
  func.func @transform_2(%arg0: i32, %arg1: i32) -> (i32, i32) {
    %c0_i32 = arith.constant 0 : i32
    %c0_i32_0 = arith.constant 0 : i32
    return %arg0, %c0_i32 : i32, i32
  }
  func.func @transform_3(%arg0: i32, %arg1: i32) -> (i32, i32) {
    %c0_i32 = arith.constant 0 : i32
    %c0_i32_0 = arith.constant 0 : i32
    return %arg0, %c0_i32 : i32, i32
  }
  func.func @transform_4(%arg0: i32, %arg1: i32) -> (i32, i32, i32) {
    %c0_i32 = arith.constant 0 : i32
    %c0_i32_0 = arith.constant 0 : i32
    %c0_i32_1 = arith.constant 0 : i32
    %c0_i32_2 = arith.constant 0 : i32
    return %c0_i32, %c0_i32_0, %c0_i32_1 : i32, i32, i32
  }
  func.func @transform_5(%arg0: i32, %arg1: i32) -> (i32, i32, i32) {
    %c0_i32 = arith.constant 0 : i32
    %c0_i32_0 = arith.constant 0 : i32
    %c0_i32_1 = arith.constant 0 : i32
    %c0_i32_2 = arith.constant 0 : i32
    return %c0_i32, %c0_i32_0, %c0_i32_1 : i32, i32, i32
  }
  func.func @transform_6(%arg0: i32, %arg1: i32) -> (i32, i32) {
    %c0_i32 = arith.constant 0 : i32
    %c0_i32_0 = arith.constant 0 : i32
    return %arg0, %c0_i32 : i32, i32
  }
}

</mosaic_0001>

<llo_original>
// kernel: tpu_custom_call.1
$region0: #{tpu_custom_call.1}
  #allocation0 [shape = 'u32[]', space=smem, size = 0x4, offset = 0x4, fixed_abs, tag = 'smem constant byte address 0x4 - core index']
  #allocation1 [shape = 'u32[72,128]{1,0:T(1,128)}', space=vmem, size = 0x9000, scoped, tag = 'internal scratch']
  #allocation2 [shape = 'f32[128,1]{1,0:T(8,128)}', space=vmem, size = 0x10000, scoped, tag = 'scratch operand']
  #allocation3 [shape = 'f32[128,1]{1,0:T(8,128)}', space=vmem, size = 0x10000, scoped, tag = 'scratch operand']
  #allocation4 [shape = 'f32[128,1]{1,0:T(8,128)}', space=vmem, size = 0x10000, scoped, tag = 'scratch operand']
  #allocation5 [shape = 'f32[128,1]{1,0:T(8,128)}', space=vmem, size = 0x10000, scoped, tag = 'scratch operand']
  #allocation6 [shape = 'f32[128,1]{1,0:T(8,128)}', space=vmem, size = 0x10000, scoped, tag = 'scratch operand']
  #allocation7 [shape = 'f32[128,1]{1,0:T(8,128)}', space=vmem, size = 0x10000, scoped, tag = 'scratch operand']
  #allocation8 [shape = 'f32[128,1]{1,0:T(8,128)}', space=vmem, size = 0x10000, scoped, tag = 'scratch operand']
  #allocation9 [shape = 'f32[128,1]{1,0:T(8,128)}', space=vmem, size = 0x10000, scoped, tag = 'scratch operand']
  %s0 = inlined_call_operand.vmem [shape: bf16[128,128], index: 0, kind: input, shape index: {}]
  %s1 = inlined_call_operand.vmem [shape: bf16[128,128], index: 1, kind: input, shape index: {}]
  %s2 = inlined_call_operand.vmem [shape: s32[128,1], index: 2, kind: input, shape index: {}]
  %s3 = inlined_call_operand.vmem [shape: f32[128,1], index: 3, kind: input, shape index: {}]
  %s4 = inlined_call_operand.vmem [shape: s32[1,1,128], index: 4, kind: input, shape index: {}]
  %s5 = inlined_call_operand.vmem [shape: f32[1,8,128], index: 5, kind: input, shape index: {}]
  %s6 = inlined_call_operand.vmem [shape: f32[128,1], index: 6, kind: output, shape index: {}]
  %s7 = sld [smem:[#allocation0]]
  $region42: #{tpu_custom_call.1} parent=0
    _
  %s9 = ssub.s32 1, %s7
  %s10 = scalar_select 0, %s9, %s7
  // Predicated region
  $region2: #{tpu_custom_call.1} parent=0 // pred_check
    _
  $region3: #{tpu_custom_call.1} parent=0 // pred_check_branch
    %12 = sbr.rel (0) target = $region5
  $region4: #{tpu_custom_call.1} parent=0 // pred_region
    _
  $region5: #{tpu_custom_call.1} parent=0 // pred_fallthru
    _
  // Predicated region
  $region6: #{tpu_custom_call.1} parent=0 // pred_check
    _
  $region7: #{tpu_custom_call.1} parent=0 // pred_check_branch
    %14 = sbr.rel (0) target = $region9
  $region8: #{tpu_custom_call.1} parent=0 // pred_region
    _
  $region9: #{tpu_custom_call.1} parent=0 // pred_fallthru
    _
  // Predicated region
  $region10: #{tpu_custom_call.1} parent=0 // pred_check
    _
  $region11: #{tpu_custom_call.1} parent=0 // pred_check_branch
    %16 = sbr.rel (0) target = $region13
  $region12: #{tpu_custom_call.1} parent=0 // pred_region
    _
  $region13: #{tpu_custom_call.1} parent=0 // pred_fallthru
    _
  // Predicated region
  $region14: #{tpu_custom_call.1} parent=0 // pred_check
    _
  $region15: #{tpu_custom_call.1} parent=0 // pred_check_branch
    %18 = sbr.rel (0) target = $region17
  $region16: #{tpu_custom_call.1} parent=0 // pred_region
    _
  $region17: #{tpu_custom_call.1} parent=0 // pred_fallthru
    _
  // Predicated region
  $region18: #{tpu_custom_call.1} parent=0 // pred_check
    _
  $region19: #{tpu_custom_call.1} parent=0 // pred_check_branch
    %20 = sbr.rel (0) target = $region21
  $region20: #{tpu_custom_call.1} parent=0 // pred_region
    _
  $region21: #{tpu_custom_call.1} parent=0 // pred_fallthru
    _
  // Predicated region
  $region22: #{tpu_custom_call.1} parent=0 // pred_check
    _
  $region23: #{tpu_custom_call.1} parent=0 // pred_check_branch
    %22 = sbr.rel (0) target = $region25
  $region24: #{tpu_custom_call.1} parent=0 // pred_region
    _
  $region25: #{tpu_custom_call.1} parent=0 // pred_fallthru
    _
  %p23 = scmp.eq.s32.totalorder 0, 0
  // Predicated region
  $region26: #{tpu_custom_call.1} parent=0 // pred_check
    %p24 = pneg %p23
  $region27: #{tpu_custom_call.1} parent=0 // pred_check_branch
    %26 = sbr.rel (%p24) target = $region29
  $region28: #{tpu_custom_call.1} parent=0 // pred_region
    %vm27 = vcmask 7168
    %28 = vst.msk [vmem:[#allocation2] sm:$0xff] %vm27, -1e+30
    %29 = vst.msk [vmem:[#allocation2 + $0x8] sm:$0xff] %vm27, -1e+30
    %30 = vst.msk [vmem:[#allocation2 + $0x10] sm:$0xff] %vm27, -1e+30
    %31 = vst.msk [vmem:[#allocation2 + $0x18] sm:$0xff] %vm27, -1e+30
    %32 = vst.msk [vmem:[#allocation2 + $0x20] sm:$0xff] %vm27, -1e+30
    %33 = vst.msk [vmem:[#allocation2 + $0x28] sm:$0xff] %vm27, -1e+30
    %34 = vst.msk [vmem:[#allocation2 + $0x30] sm:$0xff] %vm27, -1e+30
    %35 = vst.msk [vmem:[#allocation2 + $0x38] sm:$0xff] %vm27, -1e+30
    %36 = vst.msk [vmem:[#allocation2 + $0x40] sm:$0xff] %vm27, -1e+30
    %37 = vst.msk [vmem:[#allocation2 + $0x48] sm:$0xff] %vm27, -1e+30
    %38 = vst.msk [vmem:[#allocation2 + $0x50] sm:$0xff] %vm27, -1e+30
    %39 = vst.msk [vmem:[#allocation2 + $0x58] sm:$0xff] %vm27, -1e+30
    %40 = vst.msk [vmem:[#allocation2 + $0x60] sm:$0xff] %vm27, -1e+30
    %41 = vst.msk [vmem:[#allocation2 + $0x68] sm:$0xff] %vm27, -1e+30
    %42 = vst.msk [vmem:[#allocation2 + $0x70] sm:$0xff] %vm27, -1e+30
    %43 = vst.msk [vmem:[#allocation2 + $0x78] sm:$0xff] %vm27, -1e+30
    %44 = vst.msk [vmem:[#allocation3] sm:$0xff] %vm27, 0.0
    %45 = vst.msk [vmem:[#allocation3 + $0x8] sm:$0xff] %vm27, 0.0
    %46 = vst.msk [vmem:[#allocation3 + $0x10] sm:$0xff] %vm27, 0.0
    %47 = vst.msk [vmem:[#allocation3 + $0x18] sm:$0xff] %vm27, 0.0
    %48 = vst.msk [vmem:[#allocation3 + $0x20] sm:$0xff] %vm27, 0.0
    %49 = vst.msk [vmem:[#allocation3 + $0x28] sm:$0xff] %vm27, 0.0
    %50 = vst.msk [vmem:[#allocation3 + $0x30] sm:$0xff] %vm27, 0.0
    %51 = vst.msk [vmem:[#allocation3 + $0x38] sm:$0xff] %vm27, 0.0
    %52 = vst.msk [vmem:[#allocation3 + $0x40] sm:$0xff] %vm27, 0.0
    %53 = vst.msk [vmem:[#allocation3 + $0x48] sm:$0xff] %vm27, 0.0
    %54 = vst.msk [vmem:[#allocation3 + $0x50] sm:$0xff] %vm27, 0.0
    %55 = vst.msk [vmem:[#allocation3 + $0x58] sm:$0xff] %vm27, 0.0
    %56 = vst.msk [vmem:[#allocation3 + $0x60] sm:$0xff] %vm27, 0.0
    %57 = vst.msk [vmem:[#allocation3 + $0x68] sm:$0xff] %vm27, 0.0
    %58 = vst.msk [vmem:[#allocation3 + $0x70] sm:$0xff] %vm27, 0.0
    %59 = vst.msk [vmem:[#allocation3 + $0x78] sm:$0xff] %vm27, 0.0
    %60 = vst.msk [vmem:[#allocation4] sm:$0xff] %vm27, 0.0
    %61 = vst.msk [vmem:[#allocation4 + $0x8] sm:$0xff] %vm27, 0.0
    %62 = vst.msk [vmem:[#allocation4 + $0x10] sm:$0xff] %vm27, 0.0
    %63 = vst.msk [vmem:[#allocation4 + $0x18] sm:$0xff] %vm27, 0.0
    %64 = vst.msk [vmem:[#allocation4 + $0x20] sm:$0xff] %vm27, 0.0
    %65 = vst.msk [vmem:[#allocation4 + $0x28] sm:$0xff] %vm27, 0.0
    %66 = vst.msk [vmem:[#allocation4 + $0x30] sm:$0xff] %vm27, 0.0
    %67 = vst.msk [vmem:[#allocation4 + $0x38] sm:$0xff] %vm27, 0.0
    %68 = vst.msk [vmem:[#allocation4 + $0x40] sm:$0xff] %vm27, 0.0
    %69 = vst.msk [vmem:[#allocation4 + $0x48] sm:$0xff] %vm27, 0.0
    %70 = vst.msk [vmem:[#allocation4 + $0x50] sm:$0xff] %vm27, 0.0
    %71 = vst.msk [vmem:[#allocation4 + $0x58] sm:$0xff] %vm27, 0.0
    %72 = vst.msk [vmem:[#allocation4 + $0x60] sm:$0xff] %vm27, 0.0
    %73 = vst.msk [vmem:[#allocation4 + $0x68] sm:$0xff] %vm27, 0.0
    %74 = vst.msk [vmem:[#allocation4 + $0x70] sm:$0xff] %vm27, 0.0
    %75 = vst.msk [vmem:[#allocation4 + $0x78] sm:$0xff] %vm27, 0.0
    %76 = vst.msk [vmem:[#allocation5] sm:$0xff] %vm27, 0.0
    %77 = vst.msk [vmem:[#allocation5 + $0x8] sm:$0xff] %vm27, 0.0
    %78 = vst.msk [vmem:[#allocation5 + $0x10] sm:$0xff] %vm27, 0.0
    %79 = vst.msk [vmem:[#allocation5 + $0x18] sm:$0xff] %vm27, 0.0
    %80 = vst.msk [vmem:[#allocation5 + $0x20] sm:$0xff] %vm27, 0.0
    %81 = vst.msk [vmem:[#allocation5 + $0x28] sm:$0xff] %vm27, 0.0
    %82 = vst.msk [vmem:[#allocation5 + $0x30] sm:$0xff] %vm27, 0.0
    %83 = vst.msk [vmem:[#allocation5 + $0x38] sm:$0xff] %vm27, 0.0
    %84 = vst.msk [vmem:[#allocation5 + $0x40] sm:$0xff] %vm27, 0.0
    %85 = vst.msk [vmem:[#allocation5 + $0x48] sm:$0xff] %vm27, 0.0
    %86 = vst.msk [vmem:[#allocation5 + $0x50] sm:$0xff] %vm27, 0.0
    %87 = vst.msk [vmem:[#allocation5 + $0x58] sm:$0xff] %vm27, 0.0
    %88 = vst.msk [vmem:[#allocation5 + $0x60] sm:$0xff] %vm27, 0.0
    %89 = vst.msk [vmem:[#allocation5 + $0x68] sm:$0xff] %vm27, 0.0
    %90 = vst.msk [vmem:[#allocation5 + $0x70] sm:$0xff] %vm27, 0.0
    %91 = vst.msk [vmem:[#allocation5 + $0x78] sm:$0xff] %vm27, 0.0
    %92 = vst.msk [vmem:[#allocation6] sm:$0xff] %vm27, 0.0
    %93 = vst.msk [vmem:[#allocation6 + $0x8] sm:$0xff] %vm27, 0.0
    %94 = vst.msk [vmem:[#allocation6 + $0x10] sm:$0xff] %vm27, 0.0
    %95 = vst.msk [vmem:[#allocation6 + $0x18] sm:$0xff] %vm27, 0.0
    %96 = vst.msk [vmem:[#allocation6 + $0x20] sm:$0xff] %vm27, 0.0
    %97 = vst.msk [vmem:[#allocation6 + $0x28] sm:$0xff] %vm27, 0.0
    %98 = vst.msk [vmem:[#allocation6 + $0x30] sm:$0xff] %vm27, 0.0
    %99 = vst.msk [vmem:[#allocation6 + $0x38] sm:$0xff] %vm27, 0.0
    %100 = vst.msk [vmem:[#allocation6 + $0x40] sm:$0xff] %vm27, 0.0
    %101 = vst.msk [vmem:[#allocation6 + $0x48] sm:$0xff] %vm27, 0.0
    %102 = vst.msk [vmem:[#allocation6 + $0x50] sm:$0xff] %vm27, 0.0
    %103 = vst.msk [vmem:[#allocation6 + $0x58] sm:$0xff] %vm27, 0.0
    %104 = vst.msk [vmem:[#allocation6 + $0x60] sm:$0xff] %vm27, 0.0
    %105 = vst.msk [vmem:[#allocation6 + $0x68] sm:$0xff] %vm27, 0.0
    %106 = vst.msk [vmem:[#allocation6 + $0x70] sm:$0xff] %vm27, 0.0
    %107 = vst.msk [vmem:[#allocation6 + $0x78] sm:$0xff] %vm27, 0.0
    %108 = vst.msk [vmem:[#allocation7] sm:$0xff] %vm27, 0.0
    %109 = vst.msk [vmem:[#allocation7 + $0x8] sm:$0xff] %vm27, 0.0
    %110 = vst.msk [vmem:[#allocation7 + $0x10] sm:$0xff] %vm27, 0.0
    %111 = vst.msk [vmem:[#allocation7 + $0x18] sm:$0xff] %vm27, 0.0
    %112 = vst.msk [vmem:[#allocation7 + $0x20] sm:$0xff] %vm27, 0.0
    %113 = vst.msk [vmem:[#allocation7 + $0x28] sm:$0xff] %vm27, 0.0
    %114 = vst.msk [vmem:[#allocation7 + $0x30] sm:$0xff] %vm27, 0.0
    %115 = vst.msk [vmem:[#allocation7 + $0x38] sm:$0xff] %vm27, 0.0
    %116 = vst.msk [vmem:[#allocation7 + $0x40] sm:$0xff] %vm27, 0.0
    %117 = vst.msk [vmem:[#allocation7 + $0x48] sm:$0xff] %vm27, 0.0
    %118 = vst.msk [vmem:[#allocation7 + $0x50] sm:$0xff] %vm27, 0.0
    %119 = vst.msk [vmem:[#allocation7 + $0x58] sm:$0xff] %vm27, 0.0
    %120 = vst.msk [vmem:[#allocation7 + $0x60] sm:$0xff] %vm27, 0.0
    %121 = vst.msk [vmem:[#allocation7 + $0x68] sm:$0xff] %vm27, 0.0
    %122 = vst.msk [vmem:[#allocation7 + $0x70] sm:$0xff] %vm27, 0.0
    %123 = vst.msk [vmem:[#allocation7 + $0x78] sm:$0xff] %vm27, 0.0
    %124 = vst.msk [vmem:[#allocation8] sm:$0xff] %vm27, 0.0
    %125 = vst.msk [vmem:[#allocation8 + $0x8] sm:$0xff] %vm27, 0.0
    %126 = vst.msk [vmem:[#allocation8 + $0x10] sm:$0xff] %vm27, 0.0
    %127 = vst.msk [vmem:[#allocation8 + $0x18] sm:$0xff] %vm27, 0.0
    %128 = vst.msk [vmem:[#allocation8 + $0x20] sm:$0xff] %vm27, 0.0
    %129 = vst.msk [vmem:[#allocation8 + $0x28] sm:$0xff] %vm27, 0.0
    %130 = vst.msk [vmem:[#allocation8 + $0x30] sm:$0xff] %vm27, 0.0
    %131 = vst.msk [vmem:[#allocation8 + $0x38] sm:$0xff] %vm27, 0.0
    %132 = vst.msk [vmem:[#allocation8 + $0x40] sm:$0xff] %vm27, 0.0
    %133 = vst.msk [vmem:[#allocation8 + $0x48] sm:$0xff] %vm27, 0.0
    %134 = vst.msk [vmem:[#allocation8 + $0x50] sm:$0xff] %vm27, 0.0
    %135 = vst.msk [vmem:[#allocation8 + $0x58] sm:$0xff] %vm27, 0.0
    %136 = vst.msk [vmem:[#allocation8 + $0x60] sm:$0xff] %vm27, 0.0
    %137 = vst.msk [vmem:[#allocation8 + $0x68] sm:$0xff] %vm27, 0.0
    %138 = vst.msk [vmem:[#allocation8 + $0x70] sm:$0xff] %vm27, 0.0
    %139 = vst.msk [vmem:[#allocation8 + $0x78] sm:$0xff] %vm27, 0.0
    %140 = vst.msk [vmem:[#allocation9] sm:$0xff] %vm27, 0.0
    %141 = vst.msk [vmem:[#allocation9 + $0x8] sm:$0xff] %vm27, 0.0
    %142 = vst.msk [vmem:[#allocation9 + $0x10] sm:$0xff] %vm27, 0.0
    %143 = vst.msk [vmem:[#allocation9 + $0x18] sm:$0xff] %vm27, 0.0
    %144 = vst.msk [vmem:[#allocation9 + $0x20] sm:$0xff] %vm27, 0.0
    %145 = vst.msk [vmem:[#allocation9 + $0x28] sm:$0xff] %vm27, 0.0
    %146 = vst.msk [vmem:[#allocation9 + $0x30] sm:$0xff] %vm27, 0.0
    %147 = vst.msk [vmem:[#allocation9 + $0x38] sm:$0xff] %vm27, 0.0
    %148 = vst.msk [vmem:[#allocation9 + $0x40] sm:$0xff] %vm27, 0.0
    %149 = vst.msk [vmem:[#allocation9 + $0x48] sm:$0xff] %vm27, 0.0
    %150 = vst.msk [vmem:[#allocation9 + $0x50] sm:$0xff] %vm27, 0.0
    %151 = vst.msk [vmem:[#allocation9 + $0x58] sm:$0xff] %vm27, 0.0
    %152 = vst.msk [vmem:[#allocation9 + $0x60] sm:$0xff] %vm27, 0.0
    %153 = vst.msk [vmem:[#allocation9 + $0x68] sm:$0xff] %vm27, 0.0
    %154 = vst.msk [vmem:[#allocation9 + $0x70] sm:$0xff] %vm27, 0.0
    %155 = vst.msk [vmem:[#allocation9 + $0x78] sm:$0xff] %vm27, 0.0
  $region29: #{tpu_custom_call.1} parent=0 // pred_fallthru
    _
  %v156 = vld [vmem:[%s0] sm:$0xf]
  %v157 = vld [vmem:[%s0 + $0x4] sm:$0xf]
  %v158 = vld [vmem:[%s0 + $0x8] sm:$0xf]
  %v159 = vld [vmem:[%s0 + $0xc] sm:$0xf]
  %v160 = vld [vmem:[%s0 + $0x10] sm:$0xf]
  %v161 = vld [vmem:[%s0 + $0x14] sm:$0xf]
  %v162 = vld [vmem:[%s0 + $0x18] sm:$0xf]
  %v163 = vld [vmem:[%s0 + $0x1c] sm:$0xf]
  %v164 = vld [vmem:[%s0 + $0x20] sm:$0xf]
  %v165 = vld [vmem:[%s0 + $0x24] sm:$0xf]
  %v166 = vld [vmem:[%s0 + $0x28] sm:$0xf]
  %v167 = vld [vmem:[%s0 + $0x2c] sm:$0xf]
  %v168 = vld [vmem:[%s0 + $0x30] sm:$0xf]
  %v169 = vld [vmem:[%s0 + $0x34] sm:$0xf]
  %v170 = vld [vmem:[%s0 + $0x38] sm:$0xf]
  %v171 = vld [vmem:[%s0 + $0x3c] sm:$0xf]
  %v172 = vld [vmem:[%s1] sm:$0xf]
  %v173 = vld [vmem:[%s1 + $0x4] sm:$0xf]
  %v174 = vld [vmem:[%s1 + $0x8] sm:$0xf]
  %v175 = vld [vmem:[%s1 + $0xc] sm:$0xf]
  %v176 = vld [vmem:[%s1 + $0x10] sm:$0xf]
  %v177 = vld [vmem:[%s1 + $0x14] sm:$0xf]
  %v178 = vld [vmem:[%s1 + $0x18] sm:$0xf]
  %v179 = vld [vmem:[%s1 + $0x1c] sm:$0xf]
  %v180 = vld [vmem:[%s1 + $0x20] sm:$0xf]
  %v181 = vld [vmem:[%s1 + $0x24] sm:$0xf]
  %v182 = vld [vmem:[%s1 + $0x28] sm:$0xf]
  %v183 = vld [vmem:[%s1 + $0x2c] sm:$0xf]
  %v184 = vld [vmem:[%s1 + $0x30] sm:$0xf]
  %v185 = vld [vmem:[%s1 + $0x34] sm:$0xf]
  %v186 = vld [vmem:[%s1 + $0x38] sm:$0xf]
  %v187 = vld [vmem:[%s1 + $0x3c] sm:$0xf]
  %s188 = smul.u32 0, 8
  %s189 = scalar_lea.vmem %s5, %s188
  %v190 = vld [vmem:[%s189] sm:$0xff]
  %v191 = vperm.slane %v190, 2
  %v208 = vunpack.c.l.b16 %v156
  %v209 = vunpack.c.l.b16 %v157
  %v210 = vunpack.c.l.b16 %v158
  %v211 = vunpack.c.l.b16 %v159
  %v212 = vunpack.c.l.b16 %v160
  %v213 = vunpack.c.l.b16 %v161
  %v214 = vunpack.c.l.b16 %v162
  %v215 = vunpack.c.l.b16 %v163
  %v216 = vunpack.c.l.b16 %v164
  %v217 = vunpack.c.l.b16 %v165
  %v218 = vunpack.c.l.b16 %v166
  %v219 = vunpack.c.l.b16 %v167
  %v220 = vunpack.c.l.b16 %v168
  %v221 = vunpack.c.l.b16 %v169
  %v222 = vunpack.c.l.b16 %v170
  %v223 = vunpack.c.l.b16 %v171
  %v224 = vpack.c.b16 %v209, %v208
  %v225 = vpack.c.b16 %v211, %v210
  %v226 = vpack.c.b16 %v213, %v212
  %v227 = vpack.c.b16 %v215, %v214
  %v228 = vpack.c.b16 %v217, %v216
  %v229 = vpack.c.b16 %v219, %v218
  %v230 = vpack.c.b16 %v221, %v220
  %v231 = vpack.c.b16 %v223, %v222
  %v256 = vunpack.c.l.b16 %v172
  %v257 = vunpack.c.l.b16 %v173
  %v258 = vunpack.c.l.b16 %v174
  %v259 = vunpack.c.l.b16 %v175
  %v260 = vunpack.c.l.b16 %v176
  %v261 = vunpack.c.l.b16 %v177
  %v262 = vunpack.c.l.b16 %v178
  %v263 = vunpack.c.l.b16 %v179
  %v264 = vunpack.c.l.b16 %v180
  %v265 = vunpack.c.l.b16 %v181
  %v266 = vunpack.c.l.b16 %v182
  %v267 = vunpack.c.l.b16 %v183
  %v268 = vunpack.c.l.b16 %v184
  %v269 = vunpack.c.l.b16 %v185
  %v270 = vunpack.c.l.b16 %v186
  %v271 = vunpack.c.l.b16 %v187
  %v272 = vpack.c.b16 %v257, %v256
  %v273 = vpack.c.b16 %v259, %v258
  %v274 = vpack.c.b16 %v261, %v260
  %v275 = vpack.c.b16 %v263, %v262
  %v276 = vpack.c.b16 %v265, %v264
  %v277 = vpack.c.b16 %v267, %v266
  %v278 = vpack.c.b16 %v269, %v268
  %v279 = vpack.c.b16 %v271, %v270
  %288 = vmatpush.bf16.msra.mxu0 %v279
  %289 = vmatpush.bf16.msra.mxu0 %v278
  %290 = vmatpush.bf16.msra.mxu0 %v277
  %291 = vmatpush.bf16.msra.mxu0 %v276
  %292 = vmatpush.bf16.msra.mxu0 %v275
  %293 = vmatpush.bf16.msra.mxu0 %v274
  %294 = vmatpush.bf16.msra.mxu0 %v273
  %295 = vmatpush.bf16.msra.mxu0 %v272
  %296 = vmatmul.bf16.gmra.mxu0 %v224
  %v297 = vpop.f32.mrf.mxu0
  %v298 = vadd.f32 %v191, %v297
  %v299 = vpop.f32.mrf.mxu0
  %v300 = vadd.f32 %v191, %v299
  %301 = vmatmul.bf16.gmra.mxu0 %v225
  %v302 = vpop.f32.mrf.mxu0
  %v303 = vadd.f32 %v191, %v302
  %v304 = vpop.f32.mrf.mxu0
  %v305 = vadd.f32 %v191, %v304
  %306 = vmatmul.bf16.gmra.mxu0 %v226
  %v307 = vpop.f32.mrf.mxu0
  %v308 = vadd.f32 %v191, %v307
  %v309 = vpop.f32.mrf.mxu0
  %v310 = vadd.f32 %v191, %v309
  %311 = vmatmul.bf16.gmra.mxu0 %v227
  %v312 = vpop.f32.mrf.mxu0
  %v313 = vadd.f32 %v191, %v312
  %v314 = vpop.f32.mrf.mxu0
  %v315 = vadd.f32 %v191, %v314
  %316 = vmatmul.bf16.gmra.mxu0 %v228
  %v317 = vpop.f32.mrf.mxu0
  %v318 = vadd.f32 %v191, %v317
  %v319 = vpop.f32.mrf.mxu0
  %v320 = vadd.f32 %v191, %v319
  %321 = vmatmul.bf16.gmra.mxu0 %v229
  %v322 = vpop.f32.mrf.mxu0
  %v323 = vadd.f32 %v191, %v322
  %v324 = vpop.f32.mrf.mxu0
  %v325 = vadd.f32 %v191, %v324
  %326 = vmatmul.bf16.gmra.mxu0 %v230
  %v327 = vpop.f32.mrf.mxu0
  %v328 = vadd.f32 %v191, %v327
  %v329 = vpop.f32.mrf.mxu0
  %v330 = vadd.f32 %v191, %v329
  %331 = vmatmul.bf16.gmra.mxu0 %v231
  %v332 = vpop.f32.mrf.mxu0
  %v333 = vadd.f32 %v191, %v332
  %v334 = vpop.f32.mrf.mxu0
  %v335 = vadd.f32 %v191, %v334
  %336 = vdwg.mxu0
  %v337 = vlaneseq
  %v338 = vand.u32 %v337, 127
  %v339 = vlaneseq
  %v340 = vshrl.u32 %v339, 7
  %v341 = vadd.s32 %v340, 8
  %v342 = vadd.s32 %v340, 16
  %v343 = vadd.s32 %v340, 24
  %v344 = vadd.s32 %v340, 32
  %v345 = vadd.s32 %v340, 40
  %v346 = vadd.s32 %v340, 48
  %v347 = vadd.s32 %v340, 56
  %v348 = vadd.s32 %v340, 64
  %v349 = vadd.s32 %v340, 72
  %v350 = vadd.s32 %v340, 80
  %v351 = vadd.s32 %v340, 88
  %v352 = vadd.s32 %v340, 96
  %v353 = vadd.s32 %v340, 104
  %v354 = vadd.s32 %v340, 112
  %v355 = vadd.s32 %v340, 120
  %v356 = vsub.s32 %v338, %v340
  %v357 = vsub.s32 %v338, %v341
  %v358 = vsub.s32 %v338, %v342
  %v359 = vsub.s32 %v338, %v343
  %v360 = vsub.s32 %v338, %v344
  %v361 = vsub.s32 %v338, %v345
  %v362 = vsub.s32 %v338, %v346
  %v363 = vsub.s32 %v338, %v347
  %v364 = vsub.s32 %v338, %v348
  %v365 = vsub.s32 %v338, %v349
  %v366 = vsub.s32 %v338, %v350
  %v367 = vsub.s32 %v338, %v351
  %v368 = vsub.s32 %v338, %v352
  %v369 = vsub.s32 %v338, %v353
  %v370 = vsub.s32 %v338, %v354
  %v371 = vsub.s32 %v338, %v355
  %s372 = smul.u32 0, 128
  %s373 = smul.u32 0, 128
  %s374 = ssub.s32 %s372, %s373
  %v375 = vstv %s374
  %vm376 = vcmp.ne.s32.totalorder %v356, %v375
  %vm377 = vcmp.ne.s32.totalorder %v357, %v375
  %vm378 = vcmp.ne.s32.totalorder %v358, %v375
  %vm379 = vcmp.ne.s32.totalorder %v359, %v375
  %vm380 = vcmp.ne.s32.totalorder %v360, %v375
  %vm381 = vcmp.ne.s32.totalorder %v361, %v375
  %vm382 = vcmp.ne.s32.totalorder %v362, %v375
  %vm383 = vcmp.ne.s32.totalorder %v363, %v375
  %vm384 = vcmp.ne.s32.totalorder %v364, %v375
  %vm385 = vcmp.ne.s32.totalorder %v365, %v375
  %vm386 = vcmp.ne.s32.totalorder %v366, %v375
  %vm387 = vcmp.ne.s32.totalorder %v367, %v375
  %vm388 = vcmp.ne.s32.totalorder %v368, %v375
  %vm389 = vcmp.ne.s32.totalorder %v369, %v375
  %vm390 = vcmp.ne.s32.totalorder %v370, %v375
  %vm391 = vcmp.ne.s32.totalorder %v371, %v375
  %v392 = vld [vmem:[#allocation2] sm:$0xff]
  %v393 = vld [vmem:[#allocation2 + $0x8] sm:$0xff]
  %v394 = vld [vmem:[#allocation2 + $0x10] sm:$0xff]
  %v395 = vld [vmem:[#allocation2 + $0x18] sm:$0xff]
  %v396 = vld [vmem:[#allocation2 + $0x20] sm:$0xff]
  %v397 = vld [vmem:[#allocation2 + $0x28] sm:$0xff]
  %v398 = vld [vmem:[#allocation2 + $0x30] sm:$0xff]
  %v399 = vld [vmem:[#allocation2 + $0x38] sm:$0xff]
  %v400 = vld [vmem:[#allocation2 + $0x40] sm:$0xff]
  %v401 = vld [vmem:[#allocation2 + $0x48] sm:$0xff]
  %v402 = vld [vmem:[#allocation2 + $0x50] sm:$0xff]
  %v403 = vld [vmem:[#allocation2 + $0x58] sm:$0xff]
  %v404 = vld [vmem:[#allocation2 + $0x60] sm:$0xff]
  %v405 = vld [vmem:[#allocation2 + $0x68] sm:$0xff]
  %v406 = vld [vmem:[#allocation2 + $0x70] sm:$0xff]
  %v407 = vld [vmem:[#allocation2 + $0x78] sm:$0xff]
  %408 = vmax.xlane.f32.xlu0 %v298
  %v409 = vpop.xlane.xlu0 %408
  %410 = vmax.xlane.f32.xlu0 %v300
  %v411 = vpop.xlane.xlu0 %410
  %412 = vmax.xlane.f32.xlu0 %v303
  %v413 = vpop.xlane.xlu0 %412
  %414 = vmax.xlane.f32.xlu0 %v305
  %v415 = vpop.xlane.xlu0 %414
  %416 = vmax.xlane.f32.xlu0 %v308
  %v417 = vpop.xlane.xlu0 %416
  %418 = vmax.xlane.f32.xlu0 %v310
  %v419 = vpop.xlane.xlu0 %418
  %420 = vmax.xlane.f32.xlu0 %v313
  %v421 = vpop.xlane.xlu0 %420
  %422 = vmax.xlane.f32.xlu0 %v315
  %v423 = vpop.xlane.xlu0 %422
  %424 = vmax.xlane.f32.xlu0 %v318
  %v425 = vpop.xlane.xlu0 %424
  %426 = vmax.xlane.f32.xlu0 %v320
  %v427 = vpop.xlane.xlu0 %426
  %428 = vmax.xlane.f32.xlu0 %v323
  %v429 = vpop.xlane.xlu0 %428
  %430 = vmax.xlane.f32.xlu0 %v325
  %v431 = vpop.xlane.xlu0 %430
  %432 = vmax.xlane.f32.xlu0 %v328
  %v433 = vpop.xlane.xlu0 %432
  %434 = vmax.xlane.f32.xlu0 %v330
  %v435 = vpop.xlane.xlu0 %434
  %436 = vmax.xlane.f32.xlu0 %v333
  %v437 = vpop.xlane.xlu0 %436
  %438 = vmax.xlane.f32.xlu0 %v335
  %v439 = vpop.xlane.xlu0 %438
  %v440 = vmax.f32 %v392, %v409
  %v441 = vmax.f32 %v393, %v411
  %v442 = vmax.f32 %v394, %v413
  %v443 = vmax.f32 %v395, %v415
  %v444 = vmax.f32 %v396, %v417
  %v445 = vmax.f32 %v397, %v419
  %v446 = vmax.f32 %v398, %v421
  %v447 = vmax.f32 %v399, %v423
  %v448 = vmax.f32 %v400, %v425
  %v449 = vmax.f32 %v401, %v427
  %v450 = vmax.f32 %v402, %v429
  %v451 = vmax.f32 %v403, %v431
  %v452 = vmax.f32 %v404, %v433
  %v453 = vmax.f32 %v405, %v435
  %v454 = vmax.f32 %v406, %v437
  %v455 = vmax.f32 %v407, %v439
  %v456 = vsel %vm376, %v298, -1e+30
  %v457 = vsel %vm377, %v300, -1e+30
  %v458 = vsel %vm378, %v303, -1e+30
  %v459 = vsel %vm379, %v305, -1e+30
  %v460 = vsel %vm380, %v308, -1e+30
  %v461 = vsel %vm381, %v310, -1e+30
  %v462 = vsel %vm382, %v313, -1e+30
  %v463 = vsel %vm383, %v315, -1e+30
  %v464 = vsel %vm384, %v318, -1e+30
  %v465 = vsel %vm385, %v320, -1e+30
  %v466 = vsel %vm386, %v323, -1e+30
  %v467 = vsel %vm387, %v325, -1e+30
  %v468 = vsel %vm388, %v328, -1e+30
  %v469 = vsel %vm389, %v330, -1e+30
  %v470 = vsel %vm390, %v333, -1e+30
  %v471 = vsel %vm391, %v335, -1e+30
  %473 = vset.pattern.permute.xlu0 0
  %474 = vperm.xlu0 %473, %v440
  %v475 = vpop.permute.xlu0 %474
  %478 = vset.pattern.permute.xlu0 0
  %479 = vperm.xlu0 %478, %v441
  %v480 = vpop.permute.xlu0 %479
  %483 = vset.pattern.permute.xlu0 0
  %484 = vperm.xlu0 %483, %v442
  %v485 = vpop.permute.xlu0 %484
  %488 = vset.pattern.permute.xlu0 0
  %489 = vperm.xlu0 %488, %v443
  %v490 = vpop.permute.xlu0 %489
  %493 = vset.pattern.permute.xlu0 0
  %494 = vperm.xlu0 %493, %v444
  %v495 = vpop.permute.xlu0 %494
  %498 = vset.pattern.permute.xlu0 0
  %499 = vperm.xlu0 %498, %v445
  %v500 = vpop.permute.xlu0 %499
  %503 = vset.pattern.permute.xlu0 0
  %504 = vperm.xlu0 %503, %v446
  %v505 = vpop.permute.xlu0 %504
  %508 = vset.pattern.permute.xlu0 0
  %509 = vperm.xlu0 %508, %v447
  %v510 = vpop.permute.xlu0 %509
  %513 = vset.pattern.permute.xlu0 0
  %514 = vperm.xlu0 %513, %v448
  %v515 = vpop.permute.xlu0 %514
  %518 = vset.pattern.permute.xlu0 0
  %519 = vperm.xlu0 %518, %v449
  %v520 = vpop.permute.xlu0 %519
  %523 = vset.pattern.permute.xlu0 0
  %524 = vperm.xlu0 %523, %v450
  %v525 = vpop.permute.xlu0 %524
  %528 = vset.pattern.permute.xlu0 0
  %529 = vperm.xlu0 %528, %v451
  %v530 = vpop.permute.xlu0 %529
  %533 = vset.pattern.permute.xlu0 0
  %534 = vperm.xlu0 %533, %v452
  %v535 = vpop.permute.xlu0 %534
  %538 = vset.pattern.permute.xlu0 0
  %539 = vperm.xlu0 %538, %v453
  %v540 = vpop.permute.xlu0 %539
  %543 = vset.pattern.permute.xlu0 0
  %544 = vperm.xlu0 %543, %v454
  %v545 = vpop.permute.xlu0 %544
  %548 = vset.pattern.permute.xlu0 0
  %549 = vperm.xlu0 %548, %v455
  %v550 = vpop.permute.xlu0 %549
  %v552 = vsub.f32 %v456, %v475
  %v553 = vsub.f32 %v457, %v480
  %v554 = vsub.f32 %v458, %v485
  %v555 = vsub.f32 %v459, %v490
  %v556 = vsub.f32 %v460, %v495
  %v557 = vsub.f32 %v461, %v500
  %v558 = vsub.f32 %v462, %v505
  %v559 = vsub.f32 %v463, %v510
  %v560 = vsub.f32 %v464, %v515
  %v561 = vsub.f32 %v465, %v520
  %v562 = vsub.f32 %v466, %v525
  %v563 = vsub.f32 %v467, %v530
  %v564 = vsub.f32 %v468, %v535
  %v565 = vsub.f32 %v469, %v540
  %v566 = vsub.f32 %v470, %v545
  %v567 = vsub.f32 %v471, %v550
  %v568 = vmul.f32 %v552, 1.442695
  %v569 = vpow.pop %v568
  %v570 = vmul.f32 %v553, 1.442695
  %v571 = vpow.pop %v570
  %v572 = vmul.f32 %v554, 1.442695
  %v573 = vpow.pop %v572
  %v574 = vmul.f32 %v555, 1.442695
  %v575 = vpow.pop %v574
  %v576 = vmul.f32 %v556, 1.442695
  %v577 = vpow.pop %v576
  %v578 = vmul.f32 %v557, 1.442695
  %v579 = vpow.pop %v578
  %v580 = vmul.f32 %v558, 1.442695
  %v581 = vpow.pop %v580
  %v582 = vmul.f32 %v559, 1.442695
  %v583 = vpow.pop %v582
  %v584 = vmul.f32 %v560, 1.442695
  %v585 = vpow.pop %v584
  %v586 = vmul.f32 %v561, 1.442695
  %v587 = vpow.pop %v586
  %v588 = vmul.f32 %v562, 1.442695
  %v589 = vpow.pop %v588
  %v590 = vmul.f32 %v563, 1.442695
  %v591 = vpow.pop %v590
  %v592 = vmul.f32 %v564, 1.442695
  %v593 = vpow.pop %v592
  %v594 = vmul.f32 %v565, 1.442695
  %v595 = vpow.pop %v594
  %v596 = vmul.f32 %v566, 1.442695
  %v597 = vpow.pop %v596
  %v598 = vmul.f32 %v567, 1.442695
  %v599 = vpow.pop %v598
  %v600 = vsub.f32 %v392, %v440
  %v601 = vsub.f32 %v393, %v441
  %v602 = vsub.f32 %v394, %v442
  %v603 = vsub.f32 %v395, %v443
  %v604 = vsub.f32 %v396, %v444
  %v605 = vsub.f32 %v397, %v445
  %v606 = vsub.f32 %v398, %v446
  %v607 = vsub.f32 %v399, %v447
  %v608 = vsub.f32 %v400, %v448
  %v609 = vsub.f32 %v401, %v449
  %v610 = vsub.f32 %v402, %v450
  %v611 = vsub.f32 %v403, %v451
  %v612 = vsub.f32 %v404, %v452
  %v613 = vsub.f32 %v405, %v453
  %v614 = vsub.f32 %v406, %v454
  %v615 = vsub.f32 %v407, %v455
  %v616 = vmul.f32 %v600, 1.442695
  %v617 = vpow.pop %v616
  %v618 = vmul.f32 %v601, 1.442695
  %v619 = vpow.pop %v618
  %v620 = vmul.f32 %v602, 1.442695
  %v621 = vpow.pop %v620
  %v622 = vmul.f32 %v603, 1.442695
  %v623 = vpow.pop %v622
  %v624 = vmul.f32 %v604, 1.442695
  %v625 = vpow.pop %v624
  %v626 = vmul.f32 %v605, 1.442695
  %v627 = vpow.pop %v626
  %v628 = vmul.f32 %v606, 1.442695
  %v629 = vpow.pop %v628
  %v630 = vmul.f32 %v607, 1.442695
  %v631 = vpow.pop %v630
  %v632 = vmul.f32 %v608, 1.442695
  %v633 = vpow.pop %v632
  %v634 = vmul.f32 %v609, 1.442695
  %v635 = vpow.pop %v634
  %v636 = vmul.f32 %v610, 1.442695
  %v637 = vpow.pop %v636
  %v638 = vmul.f32 %v611, 1.442695
  %v639 = vpow.pop %v638
  %v640 = vmul.f32 %v612, 1.442695
  %v641 = vpow.pop %v640
  %v642 = vmul.f32 %v613, 1.442695
  %v643 = vpow.pop %v642
  %v644 = vmul.f32 %v614, 1.442695
  %v645 = vpow.pop %v644
  %v646 = vmul.f32 %v615, 1.442695
  %v647 = vpow.pop %v646
  %v648 = vld [vmem:[#allocation3] sm:$0xff]
  %v649 = vld [vmem:[#allocation3 + $0x8] sm:$0xff]
  %v650 = vld [vmem:[#allocation3 + $0x10] sm:$0xff]
  %v651 = vld [vmem:[#allocation3 + $0x18] sm:$0xff]
  %v652 = vld [vmem:[#allocation3 + $0x20] sm:$0xff]
  %v653 = vld [vmem:[#allocation3 + $0x28] sm:$0xff]
  %v654 = vld [vmem:[#allocation3 + $0x30] sm:$0xff]
  %v655 = vld [vmem:[#allocation3 + $0x38] sm:$0xff]
  %v656 = vld [vmem:[#allocation3 + $0x40] sm:$0xff]
  %v657 = vld [vmem:[#allocation3 + $0x48] sm:$0xff]
  %v658 = vld [vmem:[#allocation3 + $0x50] sm:$0xff]
  %v659 = vld [vmem:[#allocation3 + $0x58] sm:$0xff]
  %v660 = vld [vmem:[#allocation3 + $0x60] sm:$0xff]
  %v661 = vld [vmem:[#allocation3 + $0x68] sm:$0xff]
  %v662 = vld [vmem:[#allocation3 + $0x70] sm:$0xff]
  %v663 = vld [vmem:[#allocation3 + $0x78] sm:$0xff]
  %v664 = vmul.f32 %v617, %v648
  %v665 = vmul.f32 %v619, %v649
  %v666 = vmul.f32 %v621, %v650
  %v667 = vmul.f32 %v623, %v651
  %v668 = vmul.f32 %v625, %v652
  %v669 = vmul.f32 %v627, %v653
  %v670 = vmul.f32 %v629, %v654
  %v671 = vmul.f32 %v631, %v655
  %v672 = vmul.f32 %v633, %v656
  %v673 = vmul.f32 %v635, %v657
  %v674 = vmul.f32 %v637, %v658
  %v675 = vmul.f32 %v639, %v659
  %v676 = vmul.f32 %v641, %v660
  %v677 = vmul.f32 %v643, %v661
  %v678 = vmul.f32 %v645, %v662
  %v679 = vmul.f32 %v647, %v663
  %680 = vadd.xlane.f32.xlu0 %v569
  %v681 = vpop.xlane.xlu0 %680
  %682 = vadd.xlane.f32.xlu0 %v571
  %v683 = vpop.xlane.xlu0 %682
  %684 = vadd.xlane.f32.xlu0 %v573
  %v685 = vpop.xlane.xlu0 %684
  %686 = vadd.xlane.f32.xlu0 %v575
  %v687 = vpop.xlane.xlu0 %686
  %688 = vadd.xlane.f32.xlu0 %v577
  %v689 = vpop.xlane.xlu0 %688
  %690 = vadd.xlane.f32.xlu0 %v579
  %v691 = vpop.xlane.xlu0 %690
  %692 = vadd.xlane.f32.xlu0 %v581
  %v693 = vpop.xlane.xlu0 %692
  %694 = vadd.xlane.f32.xlu0 %v583
  %v695 = vpop.xlane.xlu0 %694
  %696 = vadd.xlane.f32.xlu0 %v585
  %v697 = vpop.xlane.xlu0 %696
  %698 = vadd.xlane.f32.xlu0 %v587
  %v699 = vpop.xlane.xlu0 %698
  %700 = vadd.xlane.f32.xlu0 %v589
  %v701 = vpop.xlane.xlu0 %700
  %702 = vadd.xlane.f32.xlu0 %v591
  %v703 = vpop.xlane.xlu0 %702
  %704 = vadd.xlane.f32.xlu0 %v593
  %v705 = vpop.xlane.xlu0 %704
  %706 = vadd.xlane.f32.xlu0 %v595
  %v707 = vpop.xlane.xlu0 %706
  %708 = vadd.xlane.f32.xlu0 %v597
  %v709 = vpop.xlane.xlu0 %708
  %710 = vadd.xlane.f32.xlu0 %v599
  %v711 = vpop.xlane.xlu0 %710
  %v712 = vadd.f32 %v664, %v681
  %v713 = vadd.f32 %v665, %v683
  %v714 = vadd.f32 %v666, %v685
  %v715 = vadd.f32 %v667, %v687
  %v716 = vadd.f32 %v668, %v689
  %v717 = vadd.f32 %v669, %v691
  %v718 = vadd.f32 %v670, %v693
  %v719 = vadd.f32 %v671, %v695
  %v720 = vadd.f32 %v672, %v697
  %v721 = vadd.f32 %v673, %v699
  %v722 = vadd.f32 %v674, %v701
  %v723 = vadd.f32 %v675, %v703
  %v724 = vadd.f32 %v676, %v705
  %v725 = vadd.f32 %v677, %v707
  %v726 = vadd.f32 %v678, %v709
  %v727 = vadd.f32 %v679, %v711
  %vm728 = vcmask 7168
  %729 = vst.msk [vmem:[#allocation3] sm:$0xff] %vm728, %v712
  %730 = vst.msk [vmem:[#allocation3 + $0x8] sm:$0xff] %vm728, %v713
  %731 = vst.msk [vmem:[#allocation3 + $0x10] sm:$0xff] %vm728, %v714
  %732 = vst.msk [vmem:[#allocation3 + $0x18] sm:$0xff] %vm728, %v715
  %733 = vst.msk [vmem:[#allocation3 + $0x20] sm:$0xff] %vm728, %v716
  %734 = vst.msk [vmem:[#allocation3 + $0x28] sm:$0xff] %vm728, %v717
  %735 = vst.msk [vmem:[#allocation3 + $0x30] sm:$0xff] %vm728, %v718
  %736 = vst.msk [vmem:[#allocation3 + $0x38] sm:$0xff] %vm728, %v719
  %737 = vst.msk [vmem:[#allocation3 + $0x40] sm:$0xff] %vm728, %v720
  %738 = vst.msk [vmem:[#allocation3 + $0x48] sm:$0xff] %vm728, %v721
  %739 = vst.msk [vmem:[#allocation3 + $0x50] sm:$0xff] %vm728, %v722
  %740 = vst.msk [vmem:[#allocation3 + $0x58] sm:$0xff] %vm728, %v723
  %741 = vst.msk [vmem:[#allocation3 + $0x60] sm:$0xff] %vm728, %v724
  %742 = vst.msk [vmem:[#allocation3 + $0x68] sm:$0xff] %vm728, %v725
  %743 = vst.msk [vmem:[#allocation3 + $0x70] sm:$0xff] %vm728, %v726
  %744 = vst.msk [vmem:[#allocation3 + $0x78] sm:$0xff] %vm728, %v727
  %745 = vst.msk [vmem:[#allocation2] sm:$0xff] %vm728, %v440
  %746 = vst.msk [vmem:[#allocation2 + $0x8] sm:$0xff] %vm728, %v441
  %747 = vst.msk [vmem:[#allocation2 + $0x10] sm:$0xff] %vm728, %v442
  %748 = vst.msk [vmem:[#allocation2 + $0x18] sm:$0xff] %vm728, %v443
  %749 = vst.msk [vmem:[#allocation2 + $0x20] sm:$0xff] %vm728, %v444
  %750 = vst.msk [vmem:[#allocation2 + $0x28] sm:$0xff] %vm728, %v445
  %751 = vst.msk [vmem:[#allocation2 + $0x30] sm:$0xff] %vm728, %v446
  %752 = vst.msk [vmem:[#allocation2 + $0x38] sm:$0xff] %vm728, %v447
  %753 = vst.msk [vmem:[#allocation2 + $0x40] sm:$0xff] %vm728, %v448
  %754 = vst.msk [vmem:[#allocation2 + $0x48] sm:$0xff] %vm728, %v449
  %755 = vst.msk [vmem:[#allocation2 + $0x50] sm:$0xff] %vm728, %v450
  %756 = vst.msk [vmem:[#allocation2 + $0x58] sm:$0xff] %vm728, %v451
  %757 = vst.msk [vmem:[#allocation2 + $0x60] sm:$0xff] %vm728, %v452
  %758 = vst.msk [vmem:[#allocation2 + $0x68] sm:$0xff] %vm728, %v453
  %759 = vst.msk [vmem:[#allocation2 + $0x70] sm:$0xff] %vm728, %v454
  %760 = vst.msk [vmem:[#allocation2 + $0x78] sm:$0xff] %vm728, %v455
  %v761 = vld [vmem:[%s2] sm:$0xff]
  %v762 = vld [vmem:[%s2 + $0x8] sm:$0xff]
  %v763 = vld [vmem:[%s2 + $0x10] sm:$0xff]
  %v764 = vld [vmem:[%s2 + $0x18] sm:$0xff]
  %v765 = vld [vmem:[%s2 + $0x20] sm:$0xff]
  %v766 = vld [vmem:[%s2 + $0x28] sm:$0xff]
  %v767 = vld [vmem:[%s2 + $0x30] sm:$0xff]
  %v768 = vld [vmem:[%s2 + $0x38] sm:$0xff]
  %v769 = vld [vmem:[%s2 + $0x40] sm:$0xff]
  %v770 = vld [vmem:[%s2 + $0x48] sm:$0xff]
  %v771 = vld [vmem:[%s2 + $0x50] sm:$0xff]
  %v772 = vld [vmem:[%s2 + $0x58] sm:$0xff]
  %v773 = vld [vmem:[%s2 + $0x60] sm:$0xff]
  %v774 = vld [vmem:[%s2 + $0x68] sm:$0xff]
  %v775 = vld [vmem:[%s2 + $0x70] sm:$0xff]
  %v776 = vld [vmem:[%s2 + $0x78] sm:$0xff]
  %v777 = vld [vmem:[%s4] sm:$0x1]
  %778 = vset.pattern.permute.xlu0 0
  %779 = vperm.xlu0 %778, %v761
  %v780 = vpop.permute.xlu0 %779
  %781 = vset.pattern.permute.xlu0 0
  %782 = vperm.xlu0 %781, %v762
  %v783 = vpop.permute.xlu0 %782
  %784 = vset.pattern.permute.xlu0 0
  %785 = vperm.xlu0 %784, %v763
  %v786 = vpop.permute.xlu0 %785
  %787 = vset.pattern.permute.xlu0 0
  %788 = vperm.xlu0 %787, %v764
  %v789 = vpop.permute.xlu0 %788
  %790 = vset.pattern.permute.xlu0 0
  %791 = vperm.xlu0 %790, %v765
  %v792 = vpop.permute.xlu0 %791
  %793 = vset.pattern.permute.xlu0 0
  %794 = vperm.xlu0 %793, %v766
  %v795 = vpop.permute.xlu0 %794
  %796 = vset.pattern.permute.xlu0 0
  %797 = vperm.xlu0 %796, %v767
  %v798 = vpop.permute.xlu0 %797
  %799 = vset.pattern.permute.xlu0 0
  %800 = vperm.xlu0 %799, %v768
  %v801 = vpop.permute.xlu0 %800
  %802 = vset.pattern.permute.xlu0 0
  %803 = vperm.xlu0 %802, %v769
  %v804 = vpop.permute.xlu0 %803
  %805 = vset.pattern.permute.xlu0 0
  %806 = vperm.xlu0 %805, %v770
  %v807 = vpop.permute.xlu0 %806
  %808 = vset.pattern.permute.xlu0 0
  %809 = vperm.xlu0 %808, %v771
  %v810 = vpop.permute.xlu0 %809
  %811 = vset.pattern.permute.xlu0 0
  %812 = vperm.xlu0 %811, %v772
  %v813 = vpop.permute.xlu0 %812
  %814 = vset.pattern.permute.xlu0 0
  %815 = vperm.xlu0 %814, %v773
  %v816 = vpop.permute.xlu0 %815
  %817 = vset.pattern.permute.xlu0 0
  %818 = vperm.xlu0 %817, %v774
  %v819 = vpop.permute.xlu0 %818
  %820 = vset.pattern.permute.xlu0 0
  %821 = vperm.xlu0 %820, %v775
  %v822 = vpop.permute.xlu0 %821
  %823 = vset.pattern.permute.xlu0 0
  %824 = vperm.xlu0 %823, %v776
  %v825 = vpop.permute.xlu0 %824
  %v826 = vperm.slane %v777, 0
  %vm827 = vcmp.eq.s32.totalorder %v780, %v826
  %vm828 = vcmp.eq.s32.totalorder %v783, %v826
  %vm829 = vcmp.eq.s32.totalorder %v786, %v826
  %vm830 = vcmp.eq.s32.totalorder %v789, %v826
  %vm831 = vcmp.eq.s32.totalorder %v792, %v826
  %vm832 = vcmp.eq.s32.totalorder %v795, %v826
  %vm833 = vcmp.eq.s32.totalorder %v798, %v826
  %vm834 = vcmp.eq.s32.totalorder %v801, %v826
  %vm835 = vcmp.eq.s32.totalorder %v804, %v826
  %vm836 = vcmp.eq.s32.totalorder %v807, %v826
  %vm837 = vcmp.eq.s32.totalorder %v810, %v826
  %vm838 = vcmp.eq.s32.totalorder %v813, %v826
  %vm839 = vcmp.eq.s32.totalorder %v816, %v826
  %vm840 = vcmp.eq.s32.totalorder %v819, %v826
  %vm841 = vcmp.eq.s32.totalorder %v822, %v826
  %vm842 = vcmp.eq.s32.totalorder %v825, %v826
  %vm843 = vmand %vm827, %vm376
  %vm844 = vmand %vm828, %vm377
  %vm845 = vmand %vm829, %vm378
  %vm846 = vmand %vm830, %vm379
  %vm847 = vmand %vm831, %vm380
  %vm848 = vmand %vm832, %vm381
  %vm849 = vmand %vm833, %vm382
  %vm850 = vmand %vm834, %vm383
  %vm851 = vmand %vm835, %vm384
  %vm852 = vmand %vm836, %vm385
  %vm853 = vmand %vm837, %vm386
  %vm854 = vmand %vm838, %vm387
  %vm855 = vmand %vm839, %vm388
  %vm856 = vmand %vm840, %vm389
  %vm857 = vmand %vm841, %vm390
  %vm858 = vmand %vm842, %vm391
  %v859 = vsel %vm843, 1, 0
  %v860 = vsel %vm844, 1, 0
  %v861 = vsel %vm845, 1, 0
  %v862 = vsel %vm846, 1, 0
  %v863 = vsel %vm847, 1, 0
  %v864 = vsel %vm848, 1, 0
  %v865 = vsel %vm849, 1, 0
  %v866 = vsel %vm850, 1, 0
  %v867 = vsel %vm851, 1, 0
  %v868 = vsel %vm852, 1, 0
  %v869 = vsel %vm853, 1, 0
  %v870 = vsel %vm854, 1, 0
  %v871 = vsel %vm855, 1, 0
  %v872 = vsel %vm856, 1, 0
  %v873 = vsel %vm857, 1, 0
  %v874 = vsel %vm858, 1, 0
  %v875 = vcvt.s32.f32 %v859
  %v876 = vcvt.s32.f32 %v860
  %v877 = vcvt.s32.f32 %v861
  %v878 = vcvt.s32.f32 %v862
  %v879 = vcvt.s32.f32 %v863
  %v880 = vcvt.s32.f32 %v864
  %v881 = vcvt.s32.f32 %v865
  %v882 = vcvt.s32.f32 %v866
  %v883 = vcvt.s32.f32 %v867
  %v884 = vcvt.s32.f32 %v868
  %v885 = vcvt.s32.f32 %v869
  %v886 = vcvt.s32.f32 %v870
  %v887 = vcvt.s32.f32 %v871
  %v888 = vcvt.s32.f32 %v872
  %v889 = vcvt.s32.f32 %v873
  %v890 = vcvt.s32.f32 %v874
  %v891 = vmul.f32 %v875, %v298
  %v892 = vmul.f32 %v876, %v300
  %v893 = vmul.f32 %v877, %v303
  %v894 = vmul.f32 %v878, %v305
  %v895 = vmul.f32 %v879, %v308
  %v896 = vmul.f32 %v880, %v310
  %v897 = vmul.f32 %v881, %v313
  %v898 = vmul.f32 %v882, %v315
  %v899 = vmul.f32 %v883, %v318
  %v900 = vmul.f32 %v884, %v320
  %v901 = vmul.f32 %v885, %v323
  %v902 = vmul.f32 %v886, %v325
  %v903 = vmul.f32 %v887, %v328
  %v904 = vmul.f32 %v888, %v330
  %v905 = vmul.f32 %v889, %v333
  %v906 = vmul.f32 %v890, %v335
  %v907 = vperm.slane %v190, 0
  %v908 = vmul.f32 %v875, %v907
  %v909 = vmul.f32 %v876, %v907
  %v910 = vmul.f32 %v877, %v907
  %v911 = vmul.f32 %v878, %v907
  %v912 = vmul.f32 %v879, %v907
  %v913 = vmul.f32 %v880, %v907
  %v914 = vmul.f32 %v881, %v907
  %v915 = vmul.f32 %v882, %v907
  %v916 = vmul.f32 %v883, %v907
  %v917 = vmul.f32 %v884, %v907
  %v918 = vmul.f32 %v885, %v907
  %v919 = vmul.f32 %v886, %v907
  %v920 = vmul.f32 %v887, %v907
  %v921 = vmul.f32 %v888, %v907
  %v922 = vmul.f32 %v889, %v907
  %v923 = vmul.f32 %v890, %v907
  %v924 = vperm.slane %v190, 1
  %v925 = vmul.f32 %v875, %v924
  %v926 = vmul.f32 %v876, %v924
  %v927 = vmul.f32 %v877, %v924
  %v928 = vmul.f32 %v878, %v924
  %v929 = vmul.f32 %v879, %v924
  %v930 = vmul.f32 %v880, %v924
  %v931 = vmul.f32 %v881, %v924
  %v932 = vmul.f32 %v882, %v924
  %v933 = vmul.f32 %v883, %v924
  %v934 = vmul.f32 %v884, %v924
  %v935 = vmul.f32 %v885, %v924
  %v936 = vmul.f32 %v886, %v924
  %v937 = vmul.f32 %v887, %v924
  %v938 = vmul.f32 %v888, %v924
  %v939 = vmul.f32 %v889, %v924
  %v940 = vmul.f32 %v890, %v924
  %v941 = vld [vmem:[#allocation4] sm:$0xff]
  %v942 = vld [vmem:[#allocation4 + $0x8] sm:$0xff]
  %v943 = vld [vmem:[#allocation4 + $0x10] sm:$0xff]
  %v944 = vld [vmem:[#allocation4 + $0x18] sm:$0xff]
  %v945 = vld [vmem:[#allocation4 + $0x20] sm:$0xff]
  %v946 = vld [vmem:[#allocation4 + $0x28] sm:$0xff]
  %v947 = vld [vmem:[#allocation4 + $0x30] sm:$0xff]
  %v948 = vld [vmem:[#allocation4 + $0x38] sm:$0xff]
  %v949 = vld [vmem:[#allocation4 + $0x40] sm:$0xff]
  %v950 = vld [vmem:[#allocation4 + $0x48] sm:$0xff]
  %v951 = vld [vmem:[#allocation4 + $0x50] sm:$0xff]
  %v952 = vld [vmem:[#allocation4 + $0x58] sm:$0xff]
  %v953 = vld [vmem:[#allocation4 + $0x60] sm:$0xff]
  %v954 = vld [vmem:[#allocation4 + $0x68] sm:$0xff]
  %v955 = vld [vmem:[#allocation4 + $0x70] sm:$0xff]
  %v956 = vld [vmem:[#allocation4 + $0x78] sm:$0xff]
  %957 = vadd.xlane.f32.xlu0 %v875
  %v958 = vpop.xlane.xlu0 %957
  %959 = vadd.xlane.f32.xlu0 %v876
  %v960 = vpop.xlane.xlu0 %959
  %961 = vadd.xlane.f32.xlu0 %v877
  %v962 = vpop.xlane.xlu0 %961
  %963 = vadd.xlane.f32.xlu0 %v878
  %v964 = vpop.xlane.xlu0 %963
  %965 = vadd.xlane.f32.xlu0 %v879
  %v966 = vpop.xlane.xlu0 %965
  %967 = vadd.xlane.f32.xlu0 %v880
  %v968 = vpop.xlane.xlu0 %967
  %969 = vadd.xlane.f32.xlu0 %v881
  %v970 = vpop.xlane.xlu0 %969
  %971 = vadd.xlane.f32.xlu0 %v882
  %v972 = vpop.xlane.xlu0 %971
  %973 = vadd.xlane.f32.xlu0 %v883
  %v974 = vpop.xlane.xlu0 %973
  %975 = vadd.xlane.f32.xlu0 %v884
  %v976 = vpop.xlane.xlu0 %975
  %977 = vadd.xlane.f32.xlu0 %v885
  %v978 = vpop.xlane.xlu0 %977
  %979 = vadd.xlane.f32.xlu0 %v886
  %v980 = vpop.xlane.xlu0 %979
  %981 = vadd.xlane.f32.xlu0 %v887
  %v982 = vpop.xlane.xlu0 %981
  %983 = vadd.xlane.f32.xlu0 %v888
  %v984 = vpop.xlane.xlu0 %983
  %985 = vadd.xlane.f32.xlu0 %v889
  %v986 = vpop.xlane.xlu0 %985
  %987 = vadd.xlane.f32.xlu0 %v890
  %v988 = vpop.xlane.xlu0 %987
  %v989 = vadd.f32 %v941, %v958
  %v990 = vadd.f32 %v942, %v960
  %v991 = vadd.f32 %v943, %v962
  %v992 = vadd.f32 %v944, %v964
  %v993 = vadd.f32 %v945, %v966
  %v994 = vadd.f32 %v946, %v968
  %v995 = vadd.f32 %v947, %v970
  %v996 = vadd.f32 %v948, %v972
  %v997 = vadd.f32 %v949, %v974
  %v998 = vadd.f32 %v950, %v976
  %v999 = vadd.f32 %v951, %v978
  %v1000 = vadd.f32 %v952, %v980
  %v1001 = vadd.f32 %v953, %v982
  %v1002 = vadd.f32 %v954, %v984
  %v1003 = vadd.f32 %v955, %v986
  %v1004 = vadd.f32 %v956, %v988
  %1005 = vst.msk [vmem:[#allocation4] sm:$0xff] %vm728, %v989
  %1006 = vst.msk [vmem:[#allocation4 + $0x8] sm:$0xff] %vm728, %v990
  %1007 = vst.msk [vmem:[#allocation4 + $0x10] sm:$0xff] %vm728, %v991
  %1008 = vst.msk [vmem:[#allocation4 + $0x18] sm:$0xff] %vm728, %v992
  %1009 = vst.msk [vmem:[#allocation4 + $0x20] sm:$0xff] %vm728, %v993
  %1010 = vst.msk [vmem:[#allocation4 + $0x28] sm:$0xff] %vm728, %v994
  %1011 = vst.msk [vmem:[#allocation4 + $0x30] sm:$0xff] %vm728, %v995
  %1012 = vst.msk [vmem:[#allocation4 + $0x38] sm:$0xff] %vm728, %v996
  %1013 = vst.msk [vmem:[#allocation4 + $0x40] sm:$0xff] %vm728, %v997
  %1014 = vst.msk [vmem:[#allocation4 + $0x48] sm:$0xff] %vm728, %v998
  %1015 = vst.msk [vmem:[#allocation4 + $0x50] sm:$0xff] %vm728, %v999
  %1016 = vst.msk [vmem:[#allocation4 + $0x58] sm:$0xff] %vm728, %v1000
  %1017 = vst.msk [vmem:[#allocation4 + $0x60] sm:$0xff] %vm728, %v1001
  %1018 = vst.msk [vmem:[#allocation4 + $0x68] sm:$0xff] %vm728, %v1002
  %1019 = vst.msk [vmem:[#allocation4 + $0x70] sm:$0xff] %vm728, %v1003
  %1020 = vst.msk [vmem:[#allocation4 + $0x78] sm:$0xff] %vm728, %v1004
  %v1021 = vld [vmem:[#allocation6] sm:$0xff]
  %v1022 = vld [vmem:[#allocation6 + $0x8] sm:$0xff]
  %v1023 = vld [vmem:[#allocation6 + $0x10] sm:$0xff]
  %v1024 = vld [vmem:[#allocation6 + $0x18] sm:$0xff]
  %v1025 = vld [vmem:[#allocation6 + $0x20] sm:$0xff]
  %v1026 = vld [vmem:[#allocation6 + $0x28] sm:$0xff]
  %v1027 = vld [vmem:[#allocation6 + $0x30] sm:$0xff]
  %v1028 = vld [vmem:[#allocation6 + $0x38] sm:$0xff]
  %v1029 = vld [vmem:[#allocation6 + $0x40] sm:$0xff]
  %v1030 = vld [vmem:[#allocation6 + $0x48] sm:$0xff]
  %v1031 = vld [vmem:[#allocation6 + $0x50] sm:$0xff]
  %v1032 = vld [vmem:[#allocation6 + $0x58] sm:$0xff]
  %v1033 = vld [vmem:[#allocation6 + $0x60] sm:$0xff]
  %v1034 = vld [vmem:[#allocation6 + $0x68] sm:$0xff]
  %v1035 = vld [vmem:[#allocation6 + $0x70] sm:$0xff]
  %v1036 = vld [vmem:[#allocation6 + $0x78] sm:$0xff]
  %1037 = vadd.xlane.f32.xlu0 %v891
  %v1038 = vpop.xlane.xlu0 %1037
  %1039 = vadd.xlane.f32.xlu0 %v892
  %v1040 = vpop.xlane.xlu0 %1039
  %1041 = vadd.xlane.f32.xlu0 %v893
  %v1042 = vpop.xlane.xlu0 %1041
  %1043 = vadd.xlane.f32.xlu0 %v894
  %v1044 = vpop.xlane.xlu0 %1043
  %1045 = vadd.xlane.f32.xlu0 %v895
  %v1046 = vpop.xlane.xlu0 %1045
  %1047 = vadd.xlane.f32.xlu0 %v896
  %v1048 = vpop.xlane.xlu0 %1047
  %1049 = vadd.xlane.f32.xlu0 %v897
  %v1050 = vpop.xlane.xlu0 %1049
  %1051 = vadd.xlane.f32.xlu0 %v898
  %v1052 = vpop.xlane.xlu0 %1051
  %1053 = vadd.xlane.f32.xlu0 %v899
  %v1054 = vpop.xlane.xlu0 %1053
  %1055 = vadd.xlane.f32.xlu0 %v900
  %v1056 = vpop.xlane.xlu0 %1055
  %1057 = vadd.xlane.f32.xlu0 %v901
  %v1058 = vpop.xlane.xlu0 %1057
  %1059 = vadd.xlane.f32.xlu0 %v902
  %v1060 = vpop.xlane.xlu0 %1059
  %1061 = vadd.xlane.f32.xlu0 %v903
  %v1062 = vpop.xlane.xlu0 %1061
  %1063 = vadd.xlane.f32.xlu0 %v904
  %v1064 = vpop.xlane.xlu0 %1063
  %1065 = vadd.xlane.f32.xlu0 %v905
  %v1066 = vpop.xlane.xlu0 %1065
  %1067 = vadd.xlane.f32.xlu0 %v906
  %v1068 = vpop.xlane.xlu0 %1067
  %v1069 = vadd.f32 %v1021, %v1038
  %v1070 = vadd.f32 %v1022, %v1040
  %v1071 = vadd.f32 %v1023, %v1042
  %v1072 = vadd.f32 %v1024, %v1044
  %v1073 = vadd.f32 %v1025, %v1046
  %v1074 = vadd.f32 %v1026, %v1048
  %v1075 = vadd.f32 %v1027, %v1050
  %v1076 = vadd.f32 %v1028, %v1052
  %v1077 = vadd.f32 %v1029, %v1054
  %v1078 = vadd.f32 %v1030, %v1056
  %v1079 = vadd.f32 %v1031, %v1058
  %v1080 = vadd.f32 %v1032, %v1060
  %v1081 = vadd.f32 %v1033, %v1062
  %v1082 = vadd.f32 %v1034, %v1064
  %v1083 = vadd.f32 %v1035, %v1066
  %v1084 = vadd.f32 %v1036, %v1068
  %1085 = vst.msk [vmem:[#allocation6] sm:$0xff] %vm728, %v1069
  %1086 = vst.msk [vmem:[#allocation6 + $0x8] sm:$0xff] %vm728, %v1070
  %1087 = vst.msk [vmem:[#allocation6 + $0x10] sm:$0xff] %vm728, %v1071
  %1088 = vst.msk [vmem:[#allocation6 + $0x18] sm:$0xff] %vm728, %v1072
  %1089 = vst.msk [vmem:[#allocation6 + $0x20] sm:$0xff] %vm728, %v1073
  %1090 = vst.msk [vmem:[#allocation6 + $0x28] sm:$0xff] %vm728, %v1074
  %1091 = vst.msk [vmem:[#allocation6 + $0x30] sm:$0xff] %vm728, %v1075
  %1092 = vst.msk [vmem:[#allocation6 + $0x38] sm:$0xff] %vm728, %v1076
  %1093 = vst.msk [vmem:[#allocation6 + $0x40] sm:$0xff] %vm728, %v1077
  %1094 = vst.msk [vmem:[#allocation6 + $0x48] sm:$0xff] %vm728, %v1078
  %1095 = vst.msk [vmem:[#allocation6 + $0x50] sm:$0xff] %vm728, %v1079
  %1096 = vst.msk [vmem:[#allocation6 + $0x58] sm:$0xff] %vm728, %v1080
  %1097 = vst.msk [vmem:[#allocation6 + $0x60] sm:$0xff] %vm728, %v1081
  %1098 = vst.msk [vmem:[#allocation6 + $0x68] sm:$0xff] %vm728, %v1082
  %1099 = vst.msk [vmem:[#allocation6 + $0x70] sm:$0xff] %vm728, %v1083
  %1100 = vst.msk [vmem:[#allocation6 + $0x78] sm:$0xff] %vm728, %v1084
  %v1101 = vld [vmem:[#allocation5] sm:$0xff]
  %v1102 = vld [vmem:[#allocation5 + $0x8] sm:$0xff]
  %v1103 = vld [vmem:[#allocation5 + $0x10] sm:$0xff]
  %v1104 = vld [vmem:[#allocation5 + $0x18] sm:$0xff]
  %v1105 = vld [vmem:[#allocation5 + $0x20] sm:$0xff]
  %v1106 = vld [vmem:[#allocation5 + $0x28] sm:$0xff]
  %v1107 = vld [vmem:[#allocation5 + $0x30] sm:$0xff]
  %v1108 = vld [vmem:[#allocation5 + $0x38] sm:$0xff]
  %v1109 = vld [vmem:[#allocation5 + $0x40] sm:$0xff]
  %v1110 = vld [vmem:[#allocation5 + $0x48] sm:$0xff]
  %v1111 = vld [vmem:[#allocation5 + $0x50] sm:$0xff]
  %v1112 = vld [vmem:[#allocation5 + $0x58] sm:$0xff]
  %v1113 = vld [vmem:[#allocation5 + $0x60] sm:$0xff]
  %v1114 = vld [vmem:[#allocation5 + $0x68] sm:$0xff]
  %v1115 = vld [vmem:[#allocation5 + $0x70] sm:$0xff]
  %v1116 = vld [vmem:[#allocation5 + $0x78] sm:$0xff]
  %1117 = vadd.xlane.f32.xlu0 %v908
  %v1118 = vpop.xlane.xlu0 %1117
  %1119 = vadd.xlane.f32.xlu0 %v909
  %v1120 = vpop.xlane.xlu0 %1119
  %1121 = vadd.xlane.f32.xlu0 %v910
  %v1122 = vpop.xlane.xlu0 %1121
  %1123 = vadd.xlane.f32.xlu0 %v911
  %v1124 = vpop.xlane.xlu0 %1123
  %1125 = vadd.xlane.f32.xlu0 %v912
  %v1126 = vpop.xlane.xlu0 %1125
  %1127 = vadd.xlane.f32.xlu0 %v913
  %v1128 = vpop.xlane.xlu0 %1127
  %1129 = vadd.xlane.f32.xlu0 %v914
  %v1130 = vpop.xlane.xlu0 %1129
  %1131 = vadd.xlane.f32.xlu0 %v915
  %v1132 = vpop.xlane.xlu0 %1131
  %1133 = vadd.xlane.f32.xlu0 %v916
  %v1134 = vpop.xlane.xlu0 %1133
  %1135 = vadd.xlane.f32.xlu0 %v917
  %v1136 = vpop.xlane.xlu0 %1135
  %1137 = vadd.xlane.f32.xlu0 %v918
  %v1138 = vpop.xlane.xlu0 %1137
  %1139 = vadd.xlane.f32.xlu0 %v919
  %v1140 = vpop.xlane.xlu0 %1139
  %1141 = vadd.xlane.f32.xlu0 %v920
  %v1142 = vpop.xlane.xlu0 %1141
  %1143 = vadd.xlane.f32.xlu0 %v921
  %v1144 = vpop.xlane.xlu0 %1143
  %1145 = vadd.xlane.f32.xlu0 %v922
  %v1146 = vpop.xlane.xlu0 %1145
  %1147 = vadd.xlane.f32.xlu0 %v923
  %v1148 = vpop.xlane.xlu0 %1147
  %v1149 = vadd.f32 %v1101, %v1118
  %v1150 = vadd.f32 %v1102, %v1120
  %v1151 = vadd.f32 %v1103, %v1122
  %v1152 = vadd.f32 %v1104, %v1124
  %v1153 = vadd.f32 %v1105, %v1126
  %v1154 = vadd.f32 %v1106, %v1128
  %v1155 = vadd.f32 %v1107, %v1130
  %v1156 = vadd.f32 %v1108, %v1132
  %v1157 = vadd.f32 %v1109, %v1134
  %v1158 = vadd.f32 %v1110, %v1136
  %v1159 = vadd.f32 %v1111, %v1138
  %v1160 = vadd.f32 %v1112, %v1140
  %v1161 = vadd.f32 %v1113, %v1142
  %v1162 = vadd.f32 %v1114, %v1144
  %v1163 = vadd.f32 %v1115, %v1146
  %v1164 = vadd.f32 %v1116, %v1148
  %1165 = vst.msk [vmem:[#allocation5] sm:$0xff] %vm728, %v1149
  %1166 = vst.msk [vmem:[#allocation5 + $0x8] sm:$0xff] %vm728, %v1150
  %1167 = vst.msk [vmem:[#allocation5 + $0x10] sm:$0xff] %vm728, %v1151
  %1168 = vst.msk [vmem:[#allocation5 + $0x18] sm:$0xff] %vm728, %v1152
  %1169 = vst.msk [vmem:[#allocation5 + $0x20] sm:$0xff] %vm728, %v1153
  %1170 = vst.msk [vmem:[#allocation5 + $0x28] sm:$0xff] %vm728, %v1154
  %1171 = vst.msk [vmem:[#allocation5 + $0x30] sm:$0xff] %vm728, %v1155
  %1172 = vst.msk [vmem:[#allocation5 + $0x38] sm:$0xff] %vm728, %v1156
  %1173 = vst.msk [vmem:[#allocation5 + $0x40] sm:$0xff] %vm728, %v1157
  %1174 = vst.msk [vmem:[#allocation5 + $0x48] sm:$0xff] %vm728, %v1158
  %1175 = vst.msk [vmem:[#allocation5 + $0x50] sm:$0xff] %vm728, %v1159
  %1176 = vst.msk [vmem:[#allocation5 + $0x58] sm:$0xff] %vm728, %v1160
  %1177 = vst.msk [vmem:[#allocation5 + $0x60] sm:$0xff] %vm728, %v1161
  %1178 = vst.msk [vmem:[#allocation5 + $0x68] sm:$0xff] %vm728, %v1162
  %1179 = vst.msk [vmem:[#allocation5 + $0x70] sm:$0xff] %vm728, %v1163
  %1180 = vst.msk [vmem:[#allocation5 + $0x78] sm:$0xff] %vm728, %v1164
  %v1181 = vld [vmem:[#allocation7] sm:$0xff]
  %v1182 = vld [vmem:[#allocation7 + $0x8] sm:$0xff]
  %v1183 = vld [vmem:[#allocation7 + $0x10] sm:$0xff]
  %v1184 = vld [vmem:[#allocation7 + $0x18] sm:$0xff]
  %v1185 = vld [vmem:[#allocation7 + $0x20] sm:$0xff]
  %v1186 = vld [vmem:[#allocation7 + $0x28] sm:$0xff]
  %v1187 = vld [vmem:[#allocation7 + $0x30] sm:$0xff]
  %v1188 = vld [vmem:[#allocation7 + $0x38] sm:$0xff]
  %v1189 = vld [vmem:[#allocation7 + $0x40] sm:$0xff]
  %v1190 = vld [vmem:[#allocation7 + $0x48] sm:$0xff]
  %v1191 = vld [vmem:[#allocation7 + $0x50] sm:$0xff]
  %v1192 = vld [vmem:[#allocation7 + $0x58] sm:$0xff]
  %v1193 = vld [vmem:[#allocation7 + $0x60] sm:$0xff]
  %v1194 = vld [vmem:[#allocation7 + $0x68] sm:$0xff]
  %v1195 = vld [vmem:[#allocation7 + $0x70] sm:$0xff]
  %v1196 = vld [vmem:[#allocation7 + $0x78] sm:$0xff]
  %v1197 = vmul.f32 %v908, %v298
  %v1198 = vmul.f32 %v909, %v300
  %v1199 = vmul.f32 %v910, %v303
  %v1200 = vmul.f32 %v911, %v305
  %v1201 = vmul.f32 %v912, %v308
  %v1202 = vmul.f32 %v913, %v310
  %v1203 = vmul.f32 %v914, %v313
  %v1204 = vmul.f32 %v915, %v315
  %v1205 = vmul.f32 %v916, %v318
  %v1206 = vmul.f32 %v917, %v320
  %v1207 = vmul.f32 %v918, %v323
  %v1208 = vmul.f32 %v919, %v325
  %v1209 = vmul.f32 %v920, %v328
  %v1210 = vmul.f32 %v921, %v330
  %v1211 = vmul.f32 %v922, %v333
  %v1212 = vmul.f32 %v923, %v335
  %1213 = vadd.xlane.f32.xlu0 %v1197
  %v1214 = vpop.xlane.xlu0 %1213
  %1215 = vadd.xlane.f32.xlu0 %v1198
  %v1216 = vpop.xlane.xlu0 %1215
  %1217 = vadd.xlane.f32.xlu0 %v1199
  %v1218 = vpop.xlane.xlu0 %1217
  %1219 = vadd.xlane.f32.xlu0 %v1200
  %v1220 = vpop.xlane.xlu0 %1219
  %1221 = vadd.xlane.f32.xlu0 %v1201
  %v1222 = vpop.xlane.xlu0 %1221
  %1223 = vadd.xlane.f32.xlu0 %v1202
  %v1224 = vpop.xlane.xlu0 %1223
  %1225 = vadd.xlane.f32.xlu0 %v1203
  %v1226 = vpop.xlane.xlu0 %1225
  %1227 = vadd.xlane.f32.xlu0 %v1204
  %v1228 = vpop.xlane.xlu0 %1227
  %1229 = vadd.xlane.f32.xlu0 %v1205
  %v1230 = vpop.xlane.xlu0 %1229
  %1231 = vadd.xlane.f32.xlu0 %v1206
  %v1232 = vpop.xlane.xlu0 %1231
  %1233 = vadd.xlane.f32.xlu0 %v1207
  %v1234 = vpop.xlane.xlu0 %1233
  %1235 = vadd.xlane.f32.xlu0 %v1208
  %v1236 = vpop.xlane.xlu0 %1235
  %1237 = vadd.xlane.f32.xlu0 %v1209
  %v1238 = vpop.xlane.xlu0 %1237
  %1239 = vadd.xlane.f32.xlu0 %v1210
  %v1240 = vpop.xlane.xlu0 %1239
  %1241 = vadd.xlane.f32.xlu0 %v1211
  %v1242 = vpop.xlane.xlu0 %1241
  %1243 = vadd.xlane.f32.xlu0 %v1212
  %v1244 = vpop.xlane.xlu0 %1243
  %v1245 = vadd.f32 %v1181, %v1214
  %v1246 = vadd.f32 %v1182, %v1216
  %v1247 = vadd.f32 %v1183, %v1218
  %v1248 = vadd.f32 %v1184, %v1220
  %v1249 = vadd.f32 %v1185, %v1222
  %v1250 = vadd.f32 %v1186, %v1224
  %v1251 = vadd.f32 %v1187, %v1226
  %v1252 = vadd.f32 %v1188, %v1228
  %v1253 = vadd.f32 %v1189, %v1230
  %v1254 = vadd.f32 %v1190, %v1232
  %v1255 = vadd.f32 %v1191, %v1234
  %v1256 = vadd.f32 %v1192, %v1236
  %v1257 = vadd.f32 %v1193, %v1238
  %v1258 = vadd.f32 %v1194, %v1240
  %v1259 = vadd.f32 %v1195, %v1242
  %v1260 = vadd.f32 %v1196, %v1244
  %1261 = vst.msk [vmem:[#allocation7] sm:$0xff] %vm728, %v1245
  %1262 = vst.msk [vmem:[#allocation7 + $0x8] sm:$0xff] %vm728, %v1246
  %1263 = vst.msk [vmem:[#allocation7 + $0x10] sm:$0xff] %vm728, %v1247
  %1264 = vst.msk [vmem:[#allocation7 + $0x18] sm:$0xff] %vm728, %v1248
  %1265 = vst.msk [vmem:[#allocation7 + $0x20] sm:$0xff] %vm728, %v1249
  %1266 = vst.msk [vmem:[#allocation7 + $0x28] sm:$0xff] %vm728, %v1250
  %1267 = vst.msk [vmem:[#allocation7 + $0x30] sm:$0xff] %vm728, %v1251
  %1268 = vst.msk [vmem:[#allocation7 + $0x38] sm:$0xff] %vm728, %v1252
  %1269 = vst.msk [vmem:[#allocation7 + $0x40] sm:$0xff] %vm728, %v1253
  %1270 = vst.msk [vmem:[#allocation7 + $0x48] sm:$0xff] %vm728, %v1254
  %1271 = vst.msk [vmem:[#allocation7 + $0x50] sm:$0xff] %vm728, %v1255
  %1272 = vst.msk [vmem:[#allocation7 + $0x58] sm:$0xff] %vm728, %v1256
  %1273 = vst.msk [vmem:[#allocation7 + $0x60] sm:$0xff] %vm728, %v1257
  %1274 = vst.msk [vmem:[#allocation7 + $0x68] sm:$0xff] %vm728, %v1258
  %1275 = vst.msk [vmem:[#allocation7 + $0x70] sm:$0xff] %vm728, %v1259
  %1276 = vst.msk [vmem:[#allocation7 + $0x78] sm:$0xff] %vm728, %v1260
  %v1277 = vld [vmem:[#allocation8] sm:$0xff]
  %v1278 = vld [vmem:[#allocation8 + $0x8] sm:$0xff]
  %v1279 = vld [vmem:[#allocation8 + $0x10] sm:$0xff]
  %v1280 = vld [vmem:[#allocation8 + $0x18] sm:$0xff]
  %v1281 = vld [vmem:[#allocation8 + $0x20] sm:$0xff]
  %v1282 = vld [vmem:[#allocation8 + $0x28] sm:$0xff]
  %v1283 = vld [vmem:[#allocation8 + $0x30] sm:$0xff]
  %v1284 = vld [vmem:[#allocation8 + $0x38] sm:$0xff]
  %v1285 = vld [vmem:[#allocation8 + $0x40] sm:$0xff]
  %v1286 = vld [vmem:[#allocation8 + $0x48] sm:$0xff]
  %v1287 = vld [vmem:[#allocation8 + $0x50] sm:$0xff]
  %v1288 = vld [vmem:[#allocation8 + $0x58] sm:$0xff]
  %v1289 = vld [vmem:[#allocation8 + $0x60] sm:$0xff]
  %v1290 = vld [vmem:[#allocation8 + $0x68] sm:$0xff]
  %v1291 = vld [vmem:[#allocation8 + $0x70] sm:$0xff]
  %v1292 = vld [vmem:[#allocation8 + $0x78] sm:$0xff]
  %1293 = vadd.xlane.f32.xlu0 %v925
  %v1294 = vpop.xlane.xlu0 %1293
  %1295 = vadd.xlane.f32.xlu0 %v926
  %v1296 = vpop.xlane.xlu0 %1295
  %1297 = vadd.xlane.f32.xlu0 %v927
  %v1298 = vpop.xlane.xlu0 %1297
  %1299 = vadd.xlane.f32.xlu0 %v928
  %v1300 = vpop.xlane.xlu0 %1299
  %1301 = vadd.xlane.f32.xlu0 %v929
  %v1302 = vpop.xlane.xlu0 %1301
  %1303 = vadd.xlane.f32.xlu0 %v930
  %v1304 = vpop.xlane.xlu0 %1303
  %1305 = vadd.xlane.f32.xlu0 %v931
  %v1306 = vpop.xlane.xlu0 %1305
  %1307 = vadd.xlane.f32.xlu0 %v932
  %v1308 = vpop.xlane.xlu0 %1307
  %1309 = vadd.xlane.f32.xlu0 %v933
  %v1310 = vpop.xlane.xlu0 %1309
  %1311 = vadd.xlane.f32.xlu0 %v934
  %v1312 = vpop.xlane.xlu0 %1311
  %1313 = vadd.xlane.f32.xlu0 %v935
  %v1314 = vpop.xlane.xlu0 %1313
  %1315 = vadd.xlane.f32.xlu0 %v936
  %v1316 = vpop.xlane.xlu0 %1315
  %1317 = vadd.xlane.f32.xlu0 %v937
  %v1318 = vpop.xlane.xlu0 %1317
  %1319 = vadd.xlane.f32.xlu0 %v938
  %v1320 = vpop.xlane.xlu0 %1319
  %1321 = vadd.xlane.f32.xlu0 %v939
  %v1322 = vpop.xlane.xlu0 %1321
  %1323 = vadd.xlane.f32.xlu0 %v940
  %v1324 = vpop.xlane.xlu0 %1323
  %v1325 = vadd.f32 %v1277, %v1294
  %v1326 = vadd.f32 %v1278, %v1296
  %v1327 = vadd.f32 %v1279, %v1298
  %v1328 = vadd.f32 %v1280, %v1300
  %v1329 = vadd.f32 %v1281, %v1302
  %v1330 = vadd.f32 %v1282, %v1304
  %v1331 = vadd.f32 %v1283, %v1306
  %v1332 = vadd.f32 %v1284, %v1308
  %v1333 = vadd.f32 %v1285, %v1310
  %v1334 = vadd.f32 %v1286, %v1312
  %v1335 = vadd.f32 %v1287, %v1314
  %v1336 = vadd.f32 %v1288, %v1316
  %v1337 = vadd.f32 %v1289, %v1318
  %v1338 = vadd.f32 %v1290, %v1320
  %v1339 = vadd.f32 %v1291, %v1322
  %v1340 = vadd.f32 %v1292, %v1324
  %1341 = vst.msk [vmem:[#allocation8] sm:$0xff] %vm728, %v1325
  %1342 = vst.msk [vmem:[#allocation8 + $0x8] sm:$0xff] %vm728, %v1326
  %1343 = vst.msk [vmem:[#allocation8 + $0x10] sm:$0xff] %vm728, %v1327
  %1344 = vst.msk [vmem:[#allocation8 + $0x18] sm:$0xff] %vm728, %v1328
  %1345 = vst.msk [vmem:[#allocation8 + $0x20] sm:$0xff] %vm728, %v1329
  %1346 = vst.msk [vmem:[#allocation8 + $0x28] sm:$0xff] %vm728, %v1330
  %1347 = vst.msk [vmem:[#allocation8 + $0x30] sm:$0xff] %vm728, %v1331
  %1348 = vst.msk [vmem:[#allocation8 + $0x38] sm:$0xff] %vm728, %v1332
  %1349 = vst.msk [vmem:[#allocation8 + $0x40] sm:$0xff] %vm728, %v1333
  %1350 = vst.msk [vmem:[#allocation8 + $0x48] sm:$0xff] %vm728, %v1334
  %1351 = vst.msk [vmem:[#allocation8 + $0x50] sm:$0xff] %vm728, %v1335
  %1352 = vst.msk [vmem:[#allocation8 + $0x58] sm:$0xff] %vm728, %v1336
  %1353 = vst.msk [vmem:[#allocation8 + $0x60] sm:$0xff] %vm728, %v1337
  %1354 = vst.msk [vmem:[#allocation8 + $0x68] sm:$0xff] %vm728, %v1338
  %1355 = vst.msk [vmem:[#allocation8 + $0x70] sm:$0xff] %vm728, %v1339
  %1356 = vst.msk [vmem:[#allocation8 + $0x78] sm:$0xff] %vm728, %v1340
  %v1357 = vld [vmem:[#allocation9] sm:$0xff]
  %v1358 = vld [vmem:[#allocation9 + $0x8] sm:$0xff]
  %v1359 = vld [vmem:[#allocation9 + $0x10] sm:$0xff]
  %v1360 = vld [vmem:[#allocation9 + $0x18] sm:$0xff]
  %v1361 = vld [vmem:[#allocation9 + $0x20] sm:$0xff]
  %v1362 = vld [vmem:[#allocation9 + $0x28] sm:$0xff]
  %v1363 = vld [vmem:[#allocation9 + $0x30] sm:$0xff]
  %v1364 = vld [vmem:[#allocation9 + $0x38] sm:$0xff]
  %v1365 = vld [vmem:[#allocation9 + $0x40] sm:$0xff]
  %v1366 = vld [vmem:[#allocation9 + $0x48] sm:$0xff]
  %v1367 = vld [vmem:[#allocation9 + $0x50] sm:$0xff]
  %v1368 = vld [vmem:[#allocation9 + $0x58] sm:$0xff]
  %v1369 = vld [vmem:[#allocation9 + $0x60] sm:$0xff]
  %v1370 = vld [vmem:[#allocation9 + $0x68] sm:$0xff]
  %v1371 = vld [vmem:[#allocation9 + $0x70] sm:$0xff]
  %v1372 = vld [vmem:[#allocation9 + $0x78] sm:$0xff]
  %v1373 = vmul.f32 %v925, %v298
  %v1374 = vmul.f32 %v926, %v300
  %v1375 = vmul.f32 %v927, %v303
  %v1376 = vmul.f32 %v928, %v305
  %v1377 = vmul.f32 %v929, %v308
  %v1378 = vmul.f32 %v930, %v310
  %v1379 = vmul.f32 %v931, %v313
  %v1380 = vmul.f32 %v932, %v315
  %v1381 = vmul.f32 %v933, %v318
  %v1382 = vmul.f32 %v934, %v320
  %v1383 = vmul.f32 %v935, %v323
  %v1384 = vmul.f32 %v936, %v325
  %v1385 = vmul.f32 %v937, %v328
  %v1386 = vmul.f32 %v938, %v330
  %v1387 = vmul.f32 %v939, %v333
  %v1388 = vmul.f32 %v940, %v335
  %1389 = vadd.xlane.f32.xlu0 %v1373
  %v1390 = vpop.xlane.xlu0 %1389
  %1391 = vadd.xlane.f32.xlu0 %v1374
  %v1392 = vpop.xlane.xlu0 %1391
  %1393 = vadd.xlane.f32.xlu0 %v1375
  %v1394 = vpop.xlane.xlu0 %1393
  %1395 = vadd.xlane.f32.xlu0 %v1376
  %v1396 = vpop.xlane.xlu0 %1395
  %1397 = vadd.xlane.f32.xlu0 %v1377
  %v1398 = vpop.xlane.xlu0 %1397
  %1399 = vadd.xlane.f32.xlu0 %v1378
  %v1400 = vpop.xlane.xlu0 %1399
  %1401 = vadd.xlane.f32.xlu0 %v1379
  %v1402 = vpop.xlane.xlu0 %1401
  %1403 = vadd.xlane.f32.xlu0 %v1380
  %v1404 = vpop.xlane.xlu0 %1403
  %1405 = vadd.xlane.f32.xlu0 %v1381
  %v1406 = vpop.xlane.xlu0 %1405
  %1407 = vadd.xlane.f32.xlu0 %v1382
  %v1408 = vpop.xlane.xlu0 %1407
  %1409 = vadd.xlane.f32.xlu0 %v1383
  %v1410 = vpop.xlane.xlu0 %1409
  %1411 = vadd.xlane.f32.xlu0 %v1384
  %v1412 = vpop.xlane.xlu0 %1411
  %1413 = vadd.xlane.f32.xlu0 %v1385
  %v1414 = vpop.xlane.xlu0 %1413
  %1415 = vadd.xlane.f32.xlu0 %v1386
  %v1416 = vpop.xlane.xlu0 %1415
  %1417 = vadd.xlane.f32.xlu0 %v1387
  %v1418 = vpop.xlane.xlu0 %1417
  %1419 = vadd.xlane.f32.xlu0 %v1388
  %v1420 = vpop.xlane.xlu0 %1419
  %v1421 = vadd.f32 %v1357, %v1390
  %v1422 = vadd.f32 %v1358, %v1392
  %v1423 = vadd.f32 %v1359, %v1394
  %v1424 = vadd.f32 %v1360, %v1396
  %v1425 = vadd.f32 %v1361, %v1398
  %v1426 = vadd.f32 %v1362, %v1400
  %v1427 = vadd.f32 %v1363, %v1402
  %v1428 = vadd.f32 %v1364, %v1404
  %v1429 = vadd.f32 %v1365, %v1406
  %v1430 = vadd.f32 %v1366, %v1408
  %v1431 = vadd.f32 %v1367, %v1410
  %v1432 = vadd.f32 %v1368, %v1412
  %v1433 = vadd.f32 %v1369, %v1414
  %v1434 = vadd.f32 %v1370, %v1416
  %v1435 = vadd.f32 %v1371, %v1418
  %v1436 = vadd.f32 %v1372, %v1420
  %1437 = vst.msk [vmem:[#allocation9] sm:$0xff] %vm728, %v1421
  %1438 = vst.msk [vmem:[#allocation9 + $0x8] sm:$0xff] %vm728, %v1422
  %1439 = vst.msk [vmem:[#allocation9 + $0x10] sm:$0xff] %vm728, %v1423
  %1440 = vst.msk [vmem:[#allocation9 + $0x18] sm:$0xff] %vm728, %v1424
  %1441 = vst.msk [vmem:[#allocation9 + $0x20] sm:$0xff] %vm728, %v1425
  %1442 = vst.msk [vmem:[#allocation9 + $0x28] sm:$0xff] %vm728, %v1426
  %1443 = vst.msk [vmem:[#allocation9 + $0x30] sm:$0xff] %vm728, %v1427
  %1444 = vst.msk [vmem:[#allocation9 + $0x38] sm:$0xff] %vm728, %v1428
  %1445 = vst.msk [vmem:[#allocation9 + $0x40] sm:$0xff] %vm728, %v1429
  %1446 = vst.msk [vmem:[#allocation9 + $0x48] sm:$0xff] %vm728, %v1430
  %1447 = vst.msk [vmem:[#allocation9 + $0x50] sm:$0xff] %vm728, %v1431
  %1448 = vst.msk [vmem:[#allocation9 + $0x58] sm:$0xff] %vm728, %v1432
  %1449 = vst.msk [vmem:[#allocation9 + $0x60] sm:$0xff] %vm728, %v1433
  %1450 = vst.msk [vmem:[#allocation9 + $0x68] sm:$0xff] %vm728, %v1434
  %1451 = vst.msk [vmem:[#allocation9 + $0x70] sm:$0xff] %vm728, %v1435
  %1452 = vst.msk [vmem:[#allocation9 + $0x78] sm:$0xff] %vm728, %v1436
  // Predicated region
  $region30: #{tpu_custom_call.1} parent=0 // pred_check
    %p1453 = pneg %p23
  $region31: #{tpu_custom_call.1} parent=0 // pred_check_branch
    %1455 = sbr.rel (%p1453) target = $region33
  $region32: #{tpu_custom_call.1} parent=0 // pred_region
    %v1456 = vld [vmem:[#allocation2] sm:$0xff]
    %v1457 = vld [vmem:[#allocation2 + $0x8] sm:$0xff]
    %v1458 = vld [vmem:[#allocation2 + $0x10] sm:$0xff]
    %v1459 = vld [vmem:[#allocation2 + $0x18] sm:$0xff]
    %v1460 = vld [vmem:[#allocation2 + $0x20] sm:$0xff]
    %v1461 = vld [vmem:[#allocation2 + $0x28] sm:$0xff]
    %v1462 = vld [vmem:[#allocation2 + $0x30] sm:$0xff]
    %v1463 = vld [vmem:[#allocation2 + $0x38] sm:$0xff]
    %v1464 = vld [vmem:[#allocation2 + $0x40] sm:$0xff]
    %v1465 = vld [vmem:[#allocation2 + $0x48] sm:$0xff]
    %v1466 = vld [vmem:[#allocation2 + $0x50] sm:$0xff]
    %v1467 = vld [vmem:[#allocation2 + $0x58] sm:$0xff]
    %v1468 = vld [vmem:[#allocation2 + $0x60] sm:$0xff]
    %v1469 = vld [vmem:[#allocation2 + $0x68] sm:$0xff]
    %v1470 = vld [vmem:[#allocation2 + $0x70] sm:$0xff]
    %v1471 = vld [vmem:[#allocation2 + $0x78] sm:$0xff]
    %v1472 = vld [vmem:[#allocation3] sm:$0xff]
    %v1473 = vld [vmem:[#allocation3 + $0x8] sm:$0xff]
    %v1474 = vld [vmem:[#allocation3 + $0x10] sm:$0xff]
    %v1475 = vld [vmem:[#allocation3 + $0x18] sm:$0xff]
    %v1476 = vld [vmem:[#allocation3 + $0x20] sm:$0xff]
    %v1477 = vld [vmem:[#allocation3 + $0x28] sm:$0xff]
    %v1478 = vld [vmem:[#allocation3 + $0x30] sm:$0xff]
    %v1479 = vld [vmem:[#allocation3 + $0x38] sm:$0xff]
    %v1480 = vld [vmem:[#allocation3 + $0x40] sm:$0xff]
    %v1481 = vld [vmem:[#allocation3 + $0x48] sm:$0xff]
    %v1482 = vld [vmem:[#allocation3 + $0x50] sm:$0xff]
    %v1483 = vld [vmem:[#allocation3 + $0x58] sm:$0xff]
    %v1484 = vld [vmem:[#allocation3 + $0x60] sm:$0xff]
    %v1485 = vld [vmem:[#allocation3 + $0x68] sm:$0xff]
    %v1486 = vld [vmem:[#allocation3 + $0x70] sm:$0xff]
    %v1487 = vld [vmem:[#allocation3 + $0x78] sm:$0xff]
    %v1488 = vlog2.pop %v1472
    %v1489 = vmul.f32 %v1488, 0.6931472
    %v1490 = vlog2.pop %v1473
    %v1491 = vmul.f32 %v1490, 0.6931472
    %v1492 = vlog2.pop %v1474
    %v1493 = vmul.f32 %v1492, 0.6931472
    %v1494 = vlog2.pop %v1475
    %v1495 = vmul.f32 %v1494, 0.6931472
    %v1496 = vlog2.pop %v1476
    %v1497 = vmul.f32 %v1496, 0.6931472
    %v1498 = vlog2.pop %v1477
    %v1499 = vmul.f32 %v1498, 0.6931472
    %v1500 = vlog2.pop %v1478
    %v1501 = vmul.f32 %v1500, 0.6931472
    %v1502 = vlog2.pop %v1479
    %v1503 = vmul.f32 %v1502, 0.6931472
    %v1504 = vlog2.pop %v1480
    %v1505 = vmul.f32 %v1504, 0.6931472
    %v1506 = vlog2.pop %v1481
    %v1507 = vmul.f32 %v1506, 0.6931472
    %v1508 = vlog2.pop %v1482
    %v1509 = vmul.f32 %v1508, 0.6931472
    %v1510 = vlog2.pop %v1483
    %v1511 = vmul.f32 %v1510, 0.6931472
    %v1512 = vlog2.pop %v1484
    %v1513 = vmul.f32 %v1512, 0.6931472
    %v1514 = vlog2.pop %v1485
    %v1515 = vmul.f32 %v1514, 0.6931472
    %v1516 = vlog2.pop %v1486
    %v1517 = vmul.f32 %v1516, 0.6931472
    %v1518 = vlog2.pop %v1487
    %v1519 = vmul.f32 %v1518, 0.6931472
    %v1520 = vadd.f32 %v1456, %v1489
    %v1521 = vadd.f32 %v1457, %v1491
    %v1522 = vadd.f32 %v1458, %v1493
    %v1523 = vadd.f32 %v1459, %v1495
    %v1524 = vadd.f32 %v1460, %v1497
    %v1525 = vadd.f32 %v1461, %v1499
    %v1526 = vadd.f32 %v1462, %v1501
    %v1527 = vadd.f32 %v1463, %v1503
    %v1528 = vadd.f32 %v1464, %v1505
    %v1529 = vadd.f32 %v1465, %v1507
    %v1530 = vadd.f32 %v1466, %v1509
    %v1531 = vadd.f32 %v1467, %v1511
    %v1532 = vadd.f32 %v1468, %v1513
    %v1533 = vadd.f32 %v1469, %v1515
    %v1534 = vadd.f32 %v1470, %v1517
    %v1535 = vadd.f32 %v1471, %v1519
    %v1536 = vld [vmem:[#allocation6] sm:$0xff]
    %v1537 = vld [vmem:[#allocation6 + $0x8] sm:$0xff]
    %v1538 = vld [vmem:[#allocation6 + $0x10] sm:$0xff]
    %v1539 = vld [vmem:[#allocation6 + $0x18] sm:$0xff]
    %v1540 = vld [vmem:[#allocation6 + $0x20] sm:$0xff]
    %v1541 = vld [vmem:[#allocation6 + $0x28] sm:$0xff]
    %v1542 = vld [vmem:[#allocation6 + $0x30] sm:$0xff]
    %v1543 = vld [vmem:[#allocation6 + $0x38] sm:$0xff]
    %v1544 = vld [vmem:[#allocation6 + $0x40] sm:$0xff]
    %v1545 = vld [vmem:[#allocation6 + $0x48] sm:$0xff]
    %v1546 = vld [vmem:[#allocation6 + $0x50] sm:$0xff]
    %v1547 = vld [vmem:[#allocation6 + $0x58] sm:$0xff]
    %v1548 = vld [vmem:[#allocation6 + $0x60] sm:$0xff]
    %v1549 = vld [vmem:[#allocation6 + $0x68] sm:$0xff]
    %v1550 = vld [vmem:[#allocation6 + $0x70] sm:$0xff]
    %v1551 = vld [vmem:[#allocation6 + $0x78] sm:$0xff]
    %v1552 = vld [vmem:[#allocation4] sm:$0xff]
    %v1553 = vld [vmem:[#allocation4 + $0x8] sm:$0xff]
    %v1554 = vld [vmem:[#allocation4 + $0x10] sm:$0xff]
    %v1555 = vld [vmem:[#allocation4 + $0x18] sm:$0xff]
    %v1556 = vld [vmem:[#allocation4 + $0x20] sm:$0xff]
    %v1557 = vld [vmem:[#allocation4 + $0x28] sm:$0xff]
    %v1558 = vld [vmem:[#allocation4 + $0x30] sm:$0xff]
    %v1559 = vld [vmem:[#allocation4 + $0x38] sm:$0xff]
    %v1560 = vld [vmem:[#allocation4 + $0x40] sm:$0xff]
    %v1561 = vld [vmem:[#allocation4 + $0x48] sm:$0xff]
    %v1562 = vld [vmem:[#allocation4 + $0x50] sm:$0xff]
    %v1563 = vld [vmem:[#allocation4 + $0x58] sm:$0xff]
    %v1564 = vld [vmem:[#allocation4 + $0x60] sm:$0xff]
    %v1565 = vld [vmem:[#allocation4 + $0x68] sm:$0xff]
    %v1566 = vld [vmem:[#allocation4 + $0x70] sm:$0xff]
    %v1567 = vld [vmem:[#allocation4 + $0x78] sm:$0xff]
    %v1568 = vmul.f32 %v1520, %v1552
    %v1569 = vmul.f32 %v1521, %v1553
    %v1570 = vmul.f32 %v1522, %v1554
    %v1571 = vmul.f32 %v1523, %v1555
    %v1572 = vmul.f32 %v1524, %v1556
    %v1573 = vmul.f32 %v1525, %v1557
    %v1574 = vmul.f32 %v1526, %v1558
    %v1575 = vmul.f32 %v1527, %v1559
    %v1576 = vmul.f32 %v1528, %v1560
    %v1577 = vmul.f32 %v1529, %v1561
    %v1578 = vmul.f32 %v1530, %v1562
    %v1579 = vmul.f32 %v1531, %v1563
    %v1580 = vmul.f32 %v1532, %v1564
    %v1581 = vmul.f32 %v1533, %v1565
    %v1582 = vmul.f32 %v1534, %v1566
    %v1583 = vmul.f32 %v1535, %v1567
    %v1584 = vsub.f32 %v1536, %v1568
    %v1585 = vsub.f32 %v1537, %v1569
    %v1586 = vsub.f32 %v1538, %v1570
    %v1587 = vsub.f32 %v1539, %v1571
    %v1588 = vsub.f32 %v1540, %v1572
    %v1589 = vsub.f32 %v1541, %v1573
    %v1590 = vsub.f32 %v1542, %v1574
    %v1591 = vsub.f32 %v1543, %v1575
    %v1592 = vsub.f32 %v1544, %v1576
    %v1593 = vsub.f32 %v1545, %v1577
    %v1594 = vsub.f32 %v1546, %v1578
    %v1595 = vsub.f32 %v1547, %v1579
    %v1596 = vsub.f32 %v1548, %v1580
    %v1597 = vsub.f32 %v1549, %v1581
    %v1598 = vsub.f32 %v1550, %v1582
    %v1599 = vsub.f32 %v1551, %v1583
    %v1600 = vld [vmem:[#allocation7] sm:$0xff]
    %v1601 = vld [vmem:[#allocation7 + $0x8] sm:$0xff]
    %v1602 = vld [vmem:[#allocation7 + $0x10] sm:$0xff]
    %v1603 = vld [vmem:[#allocation7 + $0x18] sm:$0xff]
    %v1604 = vld [vmem:[#allocation7 + $0x20] sm:$0xff]
    %v1605 = vld [vmem:[#allocation7 + $0x28] sm:$0xff]
    %v1606 = vld [vmem:[#allocation7 + $0x30] sm:$0xff]
    %v1607 = vld [vmem:[#allocation7 + $0x38] sm:$0xff]
    %v1608 = vld [vmem:[#allocation7 + $0x40] sm:$0xff]
    %v1609 = vld [vmem:[#allocation7 + $0x48] sm:$0xff]
    %v1610 = vld [vmem:[#allocation7 + $0x50] sm:$0xff]
    %v1611 = vld [vmem:[#allocation7 + $0x58] sm:$0xff]
    %v1612 = vld [vmem:[#allocation7 + $0x60] sm:$0xff]
    %v1613 = vld [vmem:[#allocation7 + $0x68] sm:$0xff]
    %v1614 = vld [vmem:[#allocation7 + $0x70] sm:$0xff]
    %v1615 = vld [vmem:[#allocation7 + $0x78] sm:$0xff]
    %v1616 = vld [vmem:[#allocation5] sm:$0xff]
    %v1617 = vld [vmem:[#allocation5 + $0x8] sm:$0xff]
    %v1618 = vld [vmem:[#allocation5 + $0x10] sm:$0xff]
    %v1619 = vld [vmem:[#allocation5 + $0x18] sm:$0xff]
    %v1620 = vld [vmem:[#allocation5 + $0x20] sm:$0xff]
    %v1621 = vld [vmem:[#allocation5 + $0x28] sm:$0xff]
    %v1622 = vld [vmem:[#allocation5 + $0x30] sm:$0xff]
    %v1623 = vld [vmem:[#allocation5 + $0x38] sm:$0xff]
    %v1624 = vld [vmem:[#allocation5 + $0x40] sm:$0xff]
    %v1625 = vld [vmem:[#allocation5 + $0x48] sm:$0xff]
    %v1626 = vld [vmem:[#allocation5 + $0x50] sm:$0xff]
    %v1627 = vld [vmem:[#allocation5 + $0x58] sm:$0xff]
    %v1628 = vld [vmem:[#allocation5 + $0x60] sm:$0xff]
    %v1629 = vld [vmem:[#allocation5 + $0x68] sm:$0xff]
    %v1630 = vld [vmem:[#allocation5 + $0x70] sm:$0xff]
    %v1631 = vld [vmem:[#allocation5 + $0x78] sm:$0xff]
    %v1632 = vmul.f32 %v1520, %v1616
    %v1633 = vmul.f32 %v1521, %v1617
    %v1634 = vmul.f32 %v1522, %v1618
    %v1635 = vmul.f32 %v1523, %v1619
    %v1636 = vmul.f32 %v1524, %v1620
    %v1637 = vmul.f32 %v1525, %v1621
    %v1638 = vmul.f32 %v1526, %v1622
    %v1639 = vmul.f32 %v1527, %v1623
    %v1640 = vmul.f32 %v1528, %v1624
    %v1641 = vmul.f32 %v1529, %v1625
    %v1642 = vmul.f32 %v1530, %v1626
    %v1643 = vmul.f32 %v1531, %v1627
    %v1644 = vmul.f32 %v1532, %v1628
    %v1645 = vmul.f32 %v1533, %v1629
    %v1646 = vmul.f32 %v1534, %v1630
    %v1647 = vmul.f32 %v1535, %v1631
    %v1648 = vsub.f32 %v1600, %v1632
    %v1649 = vsub.f32 %v1601, %v1633
    %v1650 = vsub.f32 %v1602, %v1634
    %v1651 = vsub.f32 %v1603, %v1635
    %v1652 = vsub.f32 %v1604, %v1636
    %v1653 = vsub.f32 %v1605, %v1637
    %v1654 = vsub.f32 %v1606, %v1638
    %v1655 = vsub.f32 %v1607, %v1639
    %v1656 = vsub.f32 %v1608, %v1640
    %v1657 = vsub.f32 %v1609, %v1641
    %v1658 = vsub.f32 %v1610, %v1642
    %v1659 = vsub.f32 %v1611, %v1643
    %v1660 = vsub.f32 %v1612, %v1644
    %v1661 = vsub.f32 %v1613, %v1645
    %v1662 = vsub.f32 %v1614, %v1646
    %v1663 = vsub.f32 %v1615, %v1647
    %v1664 = vsub.f32 %v1584, %v1648
    %v1665 = vsub.f32 %v1585, %v1649
    %v1666 = vsub.f32 %v1586, %v1650
    %v1667 = vsub.f32 %v1587, %v1651
    %v1668 = vsub.f32 %v1588, %v1652
    %v1669 = vsub.f32 %v1589, %v1653
    %v1670 = vsub.f32 %v1590, %v1654
    %v1671 = vsub.f32 %v1591, %v1655
    %v1672 = vsub.f32 %v1592, %v1656
    %v1673 = vsub.f32 %v1593, %v1657
    %v1674 = vsub.f32 %v1594, %v1658
    %v1675 = vsub.f32 %v1595, %v1659
    %v1676 = vsub.f32 %v1596, %v1660
    %v1677 = vsub.f32 %v1597, %v1661
    %v1678 = vsub.f32 %v1598, %v1662
    %v1679 = vsub.f32 %v1599, %v1663
    %v1680 = vld [vmem:[#allocation9] sm:$0xff]
    %v1681 = vld [vmem:[#allocation9 + $0x8] sm:$0xff]
    %v1682 = vld [vmem:[#allocation9 + $0x10] sm:$0xff]
    %v1683 = vld [vmem:[#allocation9 + $0x18] sm:$0xff]
    %v1684 = vld [vmem:[#allocation9 + $0x20] sm:$0xff]
    %v1685 = vld [vmem:[#allocation9 + $0x28] sm:$0xff]
    %v1686 = vld [vmem:[#allocation9 + $0x30] sm:$0xff]
    %v1687 = vld [vmem:[#allocation9 + $0x38] sm:$0xff]
    %v1688 = vld [vmem:[#allocation9 + $0x40] sm:$0xff]
    %v1689 = vld [vmem:[#allocation9 + $0x48] sm:$0xff]
    %v1690 = vld [vmem:[#allocation9 + $0x50] sm:$0xff]
    %v1691 = vld [vmem:[#allocation9 + $0x58] sm:$0xff]
    %v1692 = vld [vmem:[#allocation9 + $0x60] sm:$0xff]
    %v1693 = vld [vmem:[#allocation9 + $0x68] sm:$0xff]
    %v1694 = vld [vmem:[#allocation9 + $0x70] sm:$0xff]
    %v1695 = vld [vmem:[#allocation9 + $0x78] sm:$0xff]
    %v1696 = vld [vmem:[#allocation8] sm:$0xff]
    %v1697 = vld [vmem:[#allocation8 + $0x8] sm:$0xff]
    %v1698 = vld [vmem:[#allocation8 + $0x10] sm:$0xff]
    %v1699 = vld [vmem:[#allocation8 + $0x18] sm:$0xff]
    %v1700 = vld [vmem:[#allocation8 + $0x20] sm:$0xff]
    %v1701 = vld [vmem:[#allocation8 + $0x28] sm:$0xff]
    %v1702 = vld [vmem:[#allocation8 + $0x30] sm:$0xff]
    %v1703 = vld [vmem:[#allocation8 + $0x38] sm:$0xff]
    %v1704 = vld [vmem:[#allocation8 + $0x40] sm:$0xff]
    %v1705 = vld [vmem:[#allocation8 + $0x48] sm:$0xff]
    %v1706 = vld [vmem:[#allocation8 + $0x50] sm:$0xff]
    %v1707 = vld [vmem:[#allocation8 + $0x58] sm:$0xff]
    %v1708 = vld [vmem:[#allocation8 + $0x60] sm:$0xff]
    %v1709 = vld [vmem:[#allocation8 + $0x68] sm:$0xff]
    %v1710 = vld [vmem:[#allocation8 + $0x70] sm:$0xff]
    %v1711 = vld [vmem:[#allocation8 + $0x78] sm:$0xff]
    %v1712 = vmul.f32 %v1520, %v1696
    %v1713 = vmul.f32 %v1521, %v1697
    %v1714 = vmul.f32 %v1522, %v1698
    %v1715 = vmul.f32 %v1523, %v1699
    %v1716 = vmul.f32 %v1524, %v1700
    %v1717 = vmul.f32 %v1525, %v1701
    %v1718 = vmul.f32 %v1526, %v1702
    %v1719 = vmul.f32 %v1527, %v1703
    %v1720 = vmul.f32 %v1528, %v1704
    %v1721 = vmul.f32 %v1529, %v1705
    %v1722 = vmul.f32 %v1530, %v1706
    %v1723 = vmul.f32 %v1531, %v1707
    %v1724 = vmul.f32 %v1532, %v1708
    %v1725 = vmul.f32 %v1533, %v1709
    %v1726 = vmul.f32 %v1534, %v1710
    %v1727 = vmul.f32 %v1535, %v1711
    %v1728 = vsub.f32 %v1680, %v1712
    %v1729 = vsub.f32 %v1681, %v1713
    %v1730 = vsub.f32 %v1682, %v1714
    %v1731 = vsub.f32 %v1683, %v1715
    %v1732 = vsub.f32 %v1684, %v1716
    %v1733 = vsub.f32 %v1685, %v1717
    %v1734 = vsub.f32 %v1686, %v1718
    %v1735 = vsub.f32 %v1687, %v1719
    %v1736 = vsub.f32 %v1688, %v1720
    %v1737 = vsub.f32 %v1689, %v1721
    %v1738 = vsub.f32 %v1690, %v1722
    %v1739 = vsub.f32 %v1691, %v1723
    %v1740 = vsub.f32 %v1692, %v1724
    %v1741 = vsub.f32 %v1693, %v1725
    %v1742 = vsub.f32 %v1694, %v1726
    %v1743 = vsub.f32 %v1695, %v1727
    %v1744 = vstv %s372
    %v1745 = vadd.s32 %v1744, %v340
    %v1746 = vadd.s32 %v1744, %v341
    %v1747 = vadd.s32 %v1744, %v342
    %v1748 = vadd.s32 %v1744, %v343
    %v1749 = vadd.s32 %v1744, %v344
    %v1750 = vadd.s32 %v1744, %v345
    %v1751 = vadd.s32 %v1744, %v346
    %v1752 = vadd.s32 %v1744, %v347
    %v1753 = vadd.s32 %v1744, %v348
    %v1754 = vadd.s32 %v1744, %v349
    %v1755 = vadd.s32 %v1744, %v350
    %v1756 = vadd.s32 %v1744, %v351
    %v1757 = vadd.s32 %v1744, %v352
    %v1758 = vadd.s32 %v1744, %v353
    %v1759 = vadd.s32 %v1744, %v354
    %v1760 = vadd.s32 %v1744, %v355
    %vm1761 = vcmp.lt.s32.totalorder %v1745, 8
    %vm1762 = vcmp.lt.s32.totalorder %v1746, 8
    %vm1763 = vcmp.lt.s32.totalorder %v1747, 8
    %vm1764 = vcmp.lt.s32.totalorder %v1748, 8
    %vm1765 = vcmp.lt.s32.totalorder %v1749, 8
    %vm1766 = vcmp.lt.s32.totalorder %v1750, 8
    %vm1767 = vcmp.lt.s32.totalorder %v1751, 8
    %vm1768 = vcmp.lt.s32.totalorder %v1752, 8
    %vm1769 = vcmp.lt.s32.totalorder %v1753, 8
    %vm1770 = vcmp.lt.s32.totalorder %v1754, 8
    %vm1771 = vcmp.lt.s32.totalorder %v1755, 8
    %vm1772 = vcmp.lt.s32.totalorder %v1756, 8
    %vm1773 = vcmp.lt.s32.totalorder %v1757, 8
    %vm1774 = vcmp.lt.s32.totalorder %v1758, 8
    %vm1775 = vcmp.lt.s32.totalorder %v1759, 8
    %vm1776 = vcmp.lt.s32.totalorder %v1760, 8
    %v1777 = vmul.f32 %v1648, 2.0
    %v1778 = vmul.f32 %v1649, 2.0
    %v1779 = vmul.f32 %v1650, 2.0
    %v1780 = vmul.f32 %v1651, 2.0
    %v1781 = vmul.f32 %v1652, 2.0
    %v1782 = vmul.f32 %v1653, 2.0
    %v1783 = vmul.f32 %v1654, 2.0
    %v1784 = vmul.f32 %v1655, 2.0
    %v1785 = vmul.f32 %v1656, 2.0
    %v1786 = vmul.f32 %v1657, 2.0
    %v1787 = vmul.f32 %v1658, 2.0
    %v1788 = vmul.f32 %v1659, 2.0
    %v1789 = vmul.f32 %v1660, 2.0
    %v1790 = vmul.f32 %v1661, 2.0
    %v1791 = vmul.f32 %v1662, 2.0
    %v1792 = vmul.f32 %v1663, 2.0
    %v1793 = vadd.f32 %v1664, %v1777
    %v1794 = vadd.f32 %v1665, %v1778
    %v1795 = vadd.f32 %v1666, %v1779
    %v1796 = vadd.f32 %v1667, %v1780
    %v1797 = vadd.f32 %v1668, %v1781
    %v1798 = vadd.f32 %v1669, %v1782
    %v1799 = vadd.f32 %v1670, %v1783
    %v1800 = vadd.f32 %v1671, %v1784
    %v1801 = vadd.f32 %v1672, %v1785
    %v1802 = vadd.f32 %v1673, %v1786
    %v1803 = vadd.f32 %v1674, %v1787
    %v1804 = vadd.f32 %v1675, %v1788
    %v1805 = vadd.f32 %v1676, %v1789
    %v1806 = vadd.f32 %v1677, %v1790
    %v1807 = vadd.f32 %v1678, %v1791
    %v1808 = vadd.f32 %v1679, %v1792
    %v1809 = vsel %vm1761, %v1793, %v1648
    %v1810 = vsel %vm1762, %v1794, %v1649
    %v1811 = vsel %vm1763, %v1795, %v1650
    %v1812 = vsel %vm1764, %v1796, %v1651
    %v1813 = vsel %vm1765, %v1797, %v1652
    %v1814 = vsel %vm1766, %v1798, %v1653
    %v1815 = vsel %vm1767, %v1799, %v1654
    %v1816 = vsel %vm1768, %v1800, %v1655
    %v1817 = vsel %vm1769, %v1801, %v1656
    %v1818 = vsel %vm1770, %v1802, %v1657
    %v1819 = vsel %vm1771, %v1803, %v1658
    %v1820 = vsel %vm1772, %v1804, %v1659
    %v1821 = vsel %vm1773, %v1805, %v1660
    %v1822 = vsel %vm1774, %v1806, %v1661
    %v1823 = vsel %vm1775, %v1807, %v1662
    %v1824 = vsel %vm1776, %v1808, %v1663
    %v1825 = vld [vmem:[%s3] sm:$0xff]
    %v1826 = vld [vmem:[%s3 + $0x8] sm:$0xff]
    %v1827 = vld [vmem:[%s3 + $0x10] sm:$0xff]
    %v1828 = vld [vmem:[%s3 + $0x18] sm:$0xff]
    %v1829 = vld [vmem:[%s3 + $0x20] sm:$0xff]
    %v1830 = vld [vmem:[%s3 + $0x28] sm:$0xff]
    %v1831 = vld [vmem:[%s3 + $0x30] sm:$0xff]
    %v1832 = vld [vmem:[%s3 + $0x38] sm:$0xff]
    %v1833 = vld [vmem:[%s3 + $0x40] sm:$0xff]
    %v1834 = vld [vmem:[%s3 + $0x48] sm:$0xff]
    %v1835 = vld [vmem:[%s3 + $0x50] sm:$0xff]
    %v1836 = vld [vmem:[%s3 + $0x58] sm:$0xff]
    %v1837 = vld [vmem:[%s3 + $0x60] sm:$0xff]
    %v1838 = vld [vmem:[%s3 + $0x68] sm:$0xff]
    %v1839 = vld [vmem:[%s3 + $0x70] sm:$0xff]
    %v1840 = vld [vmem:[%s3 + $0x78] sm:$0xff]
    %v1841 = vmul.f32 %v1809, %v1825
    %v1842 = vmul.f32 %v1810, %v1826
    %v1843 = vmul.f32 %v1811, %v1827
    %v1844 = vmul.f32 %v1812, %v1828
    %v1845 = vmul.f32 %v1813, %v1829
    %v1846 = vmul.f32 %v1814, %v1830
    %v1847 = vmul.f32 %v1815, %v1831
    %v1848 = vmul.f32 %v1816, %v1832
    %v1849 = vmul.f32 %v1817, %v1833
    %v1850 = vmul.f32 %v1818, %v1834
    %v1851 = vmul.f32 %v1819, %v1835
    %v1852 = vmul.f32 %v1820, %v1836
    %v1853 = vmul.f32 %v1821, %v1837
    %v1854 = vmul.f32 %v1822, %v1838
    %v1855 = vmul.f32 %v1823, %v1839
    %v1856 = vmul.f32 %v1824, %v1840
    %v1857 = vmul.f32 %v1728, 4.0
    %v1858 = vmul.f32 %v1729, 4.0
    %v1859 = vmul.f32 %v1730, 4.0
    %v1860 = vmul.f32 %v1731, 4.0
    %v1861 = vmul.f32 %v1732, 4.0
    %v1862 = vmul.f32 %v1733, 4.0
    %v1863 = vmul.f32 %v1734, 4.0
    %v1864 = vmul.f32 %v1735, 4.0
    %v1865 = vmul.f32 %v1736, 4.0
    %v1866 = vmul.f32 %v1737, 4.0
    %v1867 = vmul.f32 %v1738, 4.0
    %v1868 = vmul.f32 %v1739, 4.0
    %v1869 = vmul.f32 %v1740, 4.0
    %v1870 = vmul.f32 %v1741, 4.0
    %v1871 = vmul.f32 %v1742, 4.0
    %v1872 = vmul.f32 %v1743, 4.0
    %v1873 = vsel %vm1761, %v1857, 0.0
    %v1874 = vsel %vm1762, %v1858, 0.0
    %v1875 = vsel %vm1763, %v1859, 0.0
    %v1876 = vsel %vm1764, %v1860, 0.0
    %v1877 = vsel %vm1765, %v1861, 0.0
    %v1878 = vsel %vm1766, %v1862, 0.0
    %v1879 = vsel %vm1767, %v1863, 0.0
    %v1880 = vsel %vm1768, %v1864, 0.0
    %v1881 = vsel %vm1769, %v1865, 0.0
    %v1882 = vsel %vm1770, %v1866, 0.0
    %v1883 = vsel %vm1771, %v1867, 0.0
    %v1884 = vsel %vm1772, %v1868, 0.0
    %v1885 = vsel %vm1773, %v1869, 0.0
    %v1886 = vsel %vm1774, %v1870, 0.0
    %v1887 = vsel %vm1775, %v1871, 0.0
    %v1888 = vsel %vm1776, %v1872, 0.0
    %v1889 = vadd.f32 %v1841, %v1873
    %v1890 = vadd.f32 %v1842, %v1874
    %v1891 = vadd.f32 %v1843, %v1875
    %v1892 = vadd.f32 %v1844, %v1876
    %v1893 = vadd.f32 %v1845, %v1877
    %v1894 = vadd.f32 %v1846, %v1878
    %v1895 = vadd.f32 %v1847, %v1879
    %v1896 = vadd.f32 %v1848, %v1880
    %v1897 = vadd.f32 %v1849, %v1881
    %v1898 = vadd.f32 %v1850, %v1882
    %v1899 = vadd.f32 %v1851, %v1883
    %v1900 = vadd.f32 %v1852, %v1884
    %v1901 = vadd.f32 %v1853, %v1885
    %v1902 = vadd.f32 %v1854, %v1886
    %v1903 = vadd.f32 %v1855, %v1887
    %v1904 = vadd.f32 %v1856, %v1888
    %vm1905 = vcmp.lt.s32.totalorder %v1745, 16
    %vm1906 = vcmp.lt.s32.totalorder %v1746, 16
    %vm1907 = vcmp.lt.s32.totalorder %v1747, 16
    %vm1908 = vcmp.lt.s32.totalorder %v1748, 16
    %vm1909 = vcmp.lt.s32.totalorder %v1749, 16
    %vm1910 = vcmp.lt.s32.totalorder %v1750, 16
    %vm1911 = vcmp.lt.s32.totalorder %v1751, 16
    %vm1912 = vcmp.lt.s32.totalorder %v1752, 16
    %vm1913 = vcmp.lt.s32.totalorder %v1753, 16
    %vm1914 = vcmp.lt.s32.totalorder %v1754, 16
    %vm1915 = vcmp.lt.s32.totalorder %v1755, 16
    %vm1916 = vcmp.lt.s32.totalorder %v1756, 16
    %vm1917 = vcmp.lt.s32.totalorder %v1757, 16
    %vm1918 = vcmp.lt.s32.totalorder %v1758, 16
    %vm1919 = vcmp.lt.s32.totalorder %v1759, 16
    %vm1920 = vcmp.lt.s32.totalorder %v1760, 16
    %v1921 = vmul.f32 %v1889, -1.0
    %v1922 = vmul.f32 %v1890, -1.0
    %v1923 = vmul.f32 %v1891, -1.0
    %v1924 = vmul.f32 %v1892, -1.0
    %v1925 = vmul.f32 %v1893, -1.0
    %v1926 = vmul.f32 %v1894, -1.0
    %v1927 = vmul.f32 %v1895, -1.0
    %v1928 = vmul.f32 %v1896, -1.0
    %v1929 = vmul.f32 %v1897, -1.0
    %v1930 = vmul.f32 %v1898, -1.0
    %v1931 = vmul.f32 %v1899, -1.0
    %v1932 = vmul.f32 %v1900, -1.0
    %v1933 = vmul.f32 %v1901, -1.0
    %v1934 = vmul.f32 %v1902, -1.0
    %v1935 = vmul.f32 %v1903, -1.0
    %v1936 = vmul.f32 %v1904, -1.0
    %v1937 = vsel %vm1905, %v1921, 0.0
    %v1938 = vsel %vm1906, %v1922, 0.0
    %v1939 = vsel %vm1907, %v1923, 0.0
    %v1940 = vsel %vm1908, %v1924, 0.0
    %v1941 = vsel %vm1909, %v1925, 0.0
    %v1942 = vsel %vm1910, %v1926, 0.0
    %v1943 = vsel %vm1911, %v1927, 0.0
    %v1944 = vsel %vm1912, %v1928, 0.0
    %v1945 = vsel %vm1913, %v1929, 0.0
    %v1946 = vsel %vm1914, %v1930, 0.0
    %v1947 = vsel %vm1915, %v1931, 0.0
    %v1948 = vsel %vm1916, %v1932, 0.0
    %v1949 = vsel %vm1917, %v1933, 0.0
    %v1950 = vsel %vm1918, %v1934, 0.0
    %v1951 = vsel %vm1919, %v1935, 0.0
    %v1952 = vsel %vm1920, %v1936, 0.0
    %1953 = vst.msk [vmem:[%s6] sm:$0xff] %vm728, %v1937
    %1954 = vst.msk [vmem:[%s6 + $0x8] sm:$0xff] %vm728, %v1938
    %1955 = vst.msk [vmem:[%s6 + $0x10] sm:$0xff] %vm728, %v1939
    %1956 = vst.msk [vmem:[%s6 + $0x18] sm:$0xff] %vm728, %v1940
    %1957 = vst.msk [vmem:[%s6 + $0x20] sm:$0xff] %vm728, %v1941
    %1958 = vst.msk [vmem:[%s6 + $0x28] sm:$0xff] %vm728, %v1942
    %1959 = vst.msk [vmem:[%s6 + $0x30] sm:$0xff] %vm728, %v1943
    %1960 = vst.msk [vmem:[%s6 + $0x38] sm:$0xff] %vm728, %v1944
    %1961 = vst.msk [vmem:[%s6 + $0x40] sm:$0xff] %vm728, %v1945
    %1962 = vst.msk [vmem:[%s6 + $0x48] sm:$0xff] %vm728, %v1946
    %1963 = vst.msk [vmem:[%s6 + $0x50] sm:$0xff] %vm728, %v1947
    %1964 = vst.msk [vmem:[%s6 + $0x58] sm:$0xff] %vm728, %v1948
    %1965 = vst.msk [vmem:[%s6 + $0x60] sm:$0xff] %vm728, %v1949
    %1966 = vst.msk [vmem:[%s6 + $0x68] sm:$0xff] %vm728, %v1950
    %1967 = vst.msk [vmem:[%s6 + $0x70] sm:$0xff] %vm728, %v1951
    %1968 = vst.msk [vmem:[%s6 + $0x78] sm:$0xff] %vm728, %v1952
  $region33: #{tpu_custom_call.1} parent=0 // pred_fallthru
    _
  // Predicated region
  $region34: #{tpu_custom_call.1} parent=0 // pred_check
    _
  $region35: #{tpu_custom_call.1} parent=0 // pred_check_branch
    %1970 = sbr.rel (0) target = $region37
  $region36: #{tpu_custom_call.1} parent=0 // pred_region
    _
  $region37: #{tpu_custom_call.1} parent=0 // pred_fallthru
    _
  // Predicated region
  $region38: #{tpu_custom_call.1} parent=0 // pred_check
    _
  $region39: #{tpu_custom_call.1} parent=0 // pred_check_branch
    %1972 = sbr.rel (0) target = $region41
  $region40: #{tpu_custom_call.1} parent=0 // pred_region
    _
  $region41: #{tpu_custom_call.1} parent=0 // pred_fallthru
    _

</llo_original>
